<compile_context>
chip_gen: v7x
topology: tpu7x:2x2x1
jax: 0.10.0
libtpu: 0.0.40
codegen_flags: <defaults>
</compile_context>

<pallas_src>
import math
from functools import partial

import jax
import jax.numpy as jnp
from jax.experimental import pallas as pl
from jax.experimental.pallas import tpu as pltpu


LN_EPS = 1e-5  # PyTorch nn.LayerNorm default


def _seq_tile(s, target=256):
    """Largest tile <= target that divides s and is a multiple of 8 (else s)."""
    if s <= target:
        return s
    for t in range(target, 7, -8):
        if s % t == 0:
            return t
    return s


def _cparams():
    return pltpu.CompilerParams(dimension_semantics=("parallel", "parallel"))


# ----------------------------------------------------------------------------
# Kernel 1: embedding linear + bias + positional-encoding add (fused epilogue)
# ----------------------------------------------------------------------------

def _embed_pe_kernel(x_ref, w_ref, b_ref, pe_ref, o_ref):
    x = x_ref[0].astype(jnp.bfloat16)                              # (ts, In)
    y = jnp.dot(x, w_ref[...], preferred_element_type=jnp.float32)  # (ts, D) f32
    y = y + b_ref[...] + pe_ref[...]
    o_ref[0] = y.astype(o_ref.dtype)


def embed_with_pe(x, w, b, pe):
    # x: (B, S, In) f32 ; w: (In, D) bf16 ; b: (1, D) f32 ; pe: (S, D) f32
    B, S, In = x.shape
    D = w.shape[1]
    ts = _seq_tile(S)
    return pl.pallas_call(
        _embed_pe_kernel,
        out_shape=jax.ShapeDtypeStruct((B, S, D), jnp.bfloat16),
        grid=(B, S // ts),
        in_specs=[
            pl.BlockSpec((1, ts, In), lambda b_, s_: (b_, s_, 0)),
            pl.BlockSpec((In, D), lambda b_, s_: (0, 0)),   # weight resident
            pl.BlockSpec((1, D), lambda b_, s_: (0, 0)),
            pl.BlockSpec((ts, D), lambda b_, s_: (s_, 0)),  # PE by seq tile
        ],
        out_specs=pl.BlockSpec((1, ts, D), lambda b_, s_: (b_, s_, 0)),
        compiler_params=_cparams(),
    )(x, w, b, pe)


# ----------------------------------------------------------------------------
# Kernel 2: fused QKV projection (one matmul for all three)
# ----------------------------------------------------------------------------

def _qkv_kernel(x_ref, w_ref, b_ref, o_ref):
    y = jnp.dot(x_ref[0], w_ref[...], preferred_element_type=jnp.float32)
    o_ref[0] = (y + b_ref[...]).astype(o_ref.dtype)


def qkv_proj(h, w, b):
    # h: (B, S, D) bf16 ; w: (D, 3D) bf16 ; b: (1, 3D) f32
    B, S, D = h.shape
    N = w.shape[1]
    ts = _seq_tile(S)
    return pl.pallas_call(
        _qkv_kernel,
        out_shape=jax.ShapeDtypeStruct((B, S, N), jnp.bfloat16),
        grid=(B, S // ts),
        in_specs=[
            pl.BlockSpec((1, ts, D), lambda b_, s_: (b_, s_, 0)),
            pl.BlockSpec((D, N), lambda b_, s_: (0, 0)),
            pl.BlockSpec((1, N), lambda b_, s_: (0, 0)),
        ],
        out_specs=pl.BlockSpec((1, ts, N), lambda b_, s_: (b_, s_, 0)),
        compiler_params=_cparams(),
    )(h, w, b)


# ----------------------------------------------------------------------------
# Kernel 3: multi-head scaled-dot-product attention
#   grid over (batch, q-tile); heads sliced from fused qkv inside the kernel,
#   full K/V rows resident per block (fits VMEM for encoder-scale S).
# ----------------------------------------------------------------------------

def _mha_kernel(qkv_q_ref, qkv_kv_ref, o_ref, *, num_heads, head_dim, scale):
    D = num_heads * head_dim
    ctxs = []
    for h in range(num_heads):
        lo = h * head_dim
        hi = lo + head_dim
        # scale q (tq x Dh) once instead of the (tq x S) score matrix
        q = (qkv_q_ref[0, :, lo:hi].astype(jnp.float32) * scale).astype(jnp.bfloat16)
        k = qkv_kv_ref[0, :, D + lo:D + hi]                        # (S, Dh) bf16
        v = qkv_kv_ref[0, :, 2 * D + lo:2 * D + hi]                # (S, Dh) bf16
        s = jax.lax.dot_general(q, k, (((1,), (1,)), ((), ())),
                                preferred_element_type=jnp.float32)  # (tq, S)
        m = jnp.max(s, axis=-1, keepdims=True)
        p = jnp.exp(s - m)
        l = jnp.sum(p, axis=-1, keepdims=True)
        p = p * pl.reciprocal(l, approx=True)
        ctx = jnp.dot(p.astype(jnp.bfloat16), v,
                      preferred_element_type=jnp.float32)            # (tq, Dh)
        ctxs.append(ctx)
    o_ref[0] = jnp.concatenate(ctxs, axis=-1).astype(o_ref.dtype)    # (tq, D)


def multihead_attention(qkv, num_heads, head_dim):
    # qkv: (B, S, 3D) bf16
    B, S, N3 = qkv.shape
    D = num_heads * head_dim
    tq = _seq_tile(S, target=128)
    scale = 1.0 / math.sqrt(head_dim)
    # TODO(synk): attn_mask (src_mask) path not implemented; module default (None) is covered.
    return pl.pallas_call(
        partial(_mha_kernel, num_heads=num_heads, head_dim=head_dim, scale=scale),
        out_shape=jax.ShapeDtypeStruct((B, S, D), jnp.bfloat16),
        grid=(B, S // tq),
        in_specs=[
            pl.BlockSpec((1, tq, N3), lambda b_, q_: (b_, q_, 0)),  # q rows tile
            pl.BlockSpec((1, S, N3), lambda b_, q_: (b_, 0, 0)),    # all K/V rows
        ],
        out_specs=pl.BlockSpec((1, tq, D), lambda b_, q_: (b_, q_, 0)),
        compiler_params=_cparams(),
    )(qkv, qkv)


# ----------------------------------------------------------------------------
# Kernel 4: out-projection + bias + residual add + LayerNorm (fused)
# ----------------------------------------------------------------------------

def _proj_res_ln_kernel(x_ref, w_ref, b_ref, res_ref, g_ref, bln_ref, o_ref, *, eps):
    y = jnp.dot(x_ref[0], w_ref[...], preferred_element_type=jnp.float32) + b_ref[...]
    z = res_ref[0].astype(jnp.float32) + y
    mu = jnp.mean(z, axis=-1, keepdims=True)
    var = jnp.mean((z - mu) * (z - mu), axis=-1, keepdims=True)
    zn = (z - mu) * jax.lax.rsqrt(var + eps)
    o_ref[0] = (zn * g_ref[...] + bln_ref[...]).astype(o_ref.dtype)


def proj_residual_layernorm(x, w, b, res, gamma, beta):
    B, S, D_in = x.shape
    D = w.shape[1]
    ts = _seq_tile(S)
    return pl.pallas_call(
        partial(_proj_res_ln_kernel, eps=LN_EPS),
        out_shape=jax.ShapeDtypeStruct((B, S, D), jnp.bfloat16),
        grid=(B, S // ts),
        in_specs=[
            pl.BlockSpec((1, ts, D_in), lambda b_, s_: (b_, s_, 0)),
            pl.BlockSpec((D_in, D), lambda b_, s_: (0, 0)),
            pl.BlockSpec((1, D), lambda b_, s_: (0, 0)),
            pl.BlockSpec((1, ts, D), lambda b_, s_: (b_, s_, 0)),   # residual
            pl.BlockSpec((1, D), lambda b_, s_: (0, 0)),
            pl.BlockSpec((1, D), lambda b_, s_: (0, 0)),
        ],
        out_specs=pl.BlockSpec((1, ts, D), lambda b_, s_: (b_, s_, 0)),
        compiler_params=_cparams(),
    )(x, w, b, res, gamma, beta)


# ----------------------------------------------------------------------------
# Kernel 5: fused FFN (ff1 + bias + ReLU + ff2 + bias) + residual + LayerNorm;
#           the (ts, ff_dim) intermediate stays in VMEM.
# ----------------------------------------------------------------------------

def _ffn_res_ln_kernel(x_ref, w1_ref, b1_ref, w2_ref, b2_ref, g_ref, bln_ref,
                       o_ref, *, eps):
    x = x_ref[0]                                                     # (ts, D) bf16
    t = jnp.dot(x, w1_ref[...], preferred_element_type=jnp.float32) + b1_ref[...]
    t = jnp.maximum(t, 0.0).astype(jnp.bfloat16)                     # (ts, F)
    y = jnp.dot(t, w2_ref[...], preferred_element_type=jnp.float32) + b2_ref[...]
    z = x.astype(jnp.float32) + y
    mu = jnp.mean(z, axis=-1, keepdims=True)
    var = jnp.mean((z - mu) * (z - mu), axis=-1, keepdims=True)
    zn = (z - mu) * jax.lax.rsqrt(var + eps)
    o_ref[0] = (zn * g_ref[...] + bln_ref[...]).astype(o_ref.dtype)


def ffn_residual_layernorm(x, w1, b1, w2, b2, gamma, beta):
    B, S, D = x.shape
    F = w1.shape[1]
    ts = _seq_tile(S)
    return pl.pallas_call(
        partial(_ffn_res_ln_kernel, eps=LN_EPS),
        out_shape=jax.ShapeDtypeStruct((B, S, D), jnp.bfloat16),
        grid=(B, S // ts),
        in_specs=[
            pl.BlockSpec((1, ts, D), lambda b_, s_: (b_, s_, 0)),
            pl.BlockSpec((D, F), lambda b_, s_: (0, 0)),
            pl.BlockSpec((1, F), lambda b_, s_: (0, 0)),
            pl.BlockSpec((F, D), lambda b_, s_: (0, 0)),
            pl.BlockSpec((1, D), lambda b_, s_: (0, 0)),
            pl.BlockSpec((1, D), lambda b_, s_: (0, 0)),
            pl.BlockSpec((1, D), lambda b_, s_: (0, 0)),
        ],
        out_specs=pl.BlockSpec((1, ts, D), lambda b_, s_: (b_, s_, 0)),
        compiler_params=_cparams(),
    )(x, w1, b1, w2, b2, gamma, beta)


# ----------------------------------------------------------------------------
# Parameters (PyTorch-layout init, then one-time prep: transpose to (K,N) bf16)
# ----------------------------------------------------------------------------

def make_positional_encoding(d_model, max_len):
    position = jnp.arange(max_len, dtype=jnp.float32)[:, None]
    div_term = jnp.exp(
        jnp.arange(0, d_model, 2, dtype=jnp.float32) * (-math.log(10000.0) / d_model)
    )
    pe = jnp.zeros((max_len, d_model), dtype=jnp.float32)
    pe = pe.at[:, 0::2].set(jnp.sin(position * div_term))
    pe = pe.at[:, 1::2].set(jnp.cos(position * div_term))
    return pe  # (max_len, d_model)


def init_params(key, input_dim, d_model, num_heads, ff_dim, num_layers, max_len):
    def dense(k, out_f, in_f, scale=0.05):
        kw, kb = jax.random.split(k)
        w = scale * jax.random.normal(kw, (out_f, in_f), dtype=jnp.float32)
        b = scale * jax.random.normal(kb, (out_f,), dtype=jnp.float32)
        return w, b

    keys = jax.random.split(key, 1 + num_layers)
    emb_w, emb_b = dense(keys[0], d_model, input_dim)
    layers = []
    for li in range(num_layers):
        lk = jax.random.split(keys[1 + li], 5)
        in_proj_w, in_proj_b = dense(lk[0], 3 * d_model, d_model)
        out_proj_w, out_proj_b = dense(lk[1], d_model, d_model)
        ff1_w, ff1_b = dense(lk[2], ff_dim, d_model)
        ff2_w, ff2_b = dense(lk[3], d_model, ff_dim)
        layers.append(dict(
            in_proj_w=in_proj_w, in_proj_b=in_proj_b,
            out_proj_w=out_proj_w, out_proj_b=out_proj_b,
            ln1_g=jnp.ones((d_model,), jnp.float32),
            ln1_b=jnp.zeros((d_model,), jnp.float32),
            ff1_w=ff1_w, ff1_b=ff1_b,
            ff2_w=ff2_w, ff2_b=ff2_b,
            ln2_g=jnp.ones((d_model,), jnp.float32),
            ln2_b=jnp.zeros((d_model,), jnp.float32),
        ))
    return dict(emb_w=emb_w, emb_b=emb_b,
                pe=make_positional_encoding(d_model, max_len), layers=layers)


def prepare_params(params):
    """One-time prep: weights -> (K, N) bf16; biases / LN params -> (1, N) f32."""
    def wt(w):
        return jnp.asarray(w.T, dtype=jnp.bfloat16)

    def row(v):
        return jnp.asarray(v, dtype=jnp.float32).reshape(1, -1)

    prepared = dict(emb_w=wt(params["emb_w"]), emb_b=row(params["emb_b"]),
                    pe=params["pe"], layers=[])
    for lp in params["layers"]:
        prepared["layers"].append(dict(
            in_proj_w=wt(lp["in_proj_w"]), in_proj_b=row(lp["in_proj_b"]),
            out_proj_w=wt(lp["out_proj_w"]), out_proj_b=row(lp["out_proj_b"]),
            ln1_g=row(lp["ln1_g"]), ln1_b=row(lp["ln1_b"]),
            ff1_w=wt(lp["ff1_w"]), ff1_b=row(lp["ff1_b"]),
            ff2_w=wt(lp["ff2_w"]), ff2_b=row(lp["ff2_b"]),
            ln2_g=row(lp["ln2_g"]), ln2_b=row(lp["ln2_b"]),
        ))
    return prepared


# ----------------------------------------------------------------------------
# Forward pass (mirrors TransformerEncoder.forward; dropout = identity / eval)
# ----------------------------------------------------------------------------

def transformer_encoder(x, prepared, num_heads):
    B, S, _ = x.shape
    D = prepared["emb_w"].shape[1]
    Dh = D // num_heads

    # embedding + positional encoding (fused)
    h = embed_with_pe(x.astype(jnp.float32), prepared["emb_w"], prepared["emb_b"],
                      prepared["pe"][:S])                            # (B, S, D) bf16

    for lp in prepared["layers"]:
        # --- self attention ---
        qkv = qkv_proj(h, lp["in_proj_w"], lp["in_proj_b"])          # (B, S, 3D)
        ctx = multihead_attention(qkv, num_heads, Dh)                # (B, S, D)
        # out-proj + residual + norm1 (dropout identity)
        h = proj_residual_layernorm(ctx, lp["out_proj_w"], lp["out_proj_b"],
                                    h, lp["ln1_g"], lp["ln1_b"])
        # --- feed forward + residual + norm2 (fused, dropout identity) ---
        h = ffn_residual_layernorm(h, lp["ff1_w"], lp["ff1_b"],
                                   lp["ff2_w"], lp["ff2_b"],
                                   lp["ln2_g"], lp["ln2_b"])

    # The module transposes to (seq, batch, d_model) before the layers; the
    # layers act rowwise, so applying the transpose once at the end is identical.
    return jnp.transpose(h, (1, 0, 2)).astype(jnp.float32)


# ----------------------------------------------------------------------------

if __name__ == "__main__":
    key = jax.random.PRNGKey(0)
    k_param, k_x = jax.random.split(key)

    # small shapes consistent with the module
    batch, seq, input_dim = 2, 8, 16
    d_model, num_heads, ff_dim, num_layers = 32, 4, 64, 2
    max_len = 64

    params = init_params(k_param, input_dim, d_model, num_heads, ff_dim,
                         num_layers, max_len)
    prepared = prepare_params(params)
    x = jax.random.normal(k_x, (batch, seq, input_dim), dtype=jnp.float32)

    fwd = jax.jit(partial(transformer_encoder, num_heads=num_heads))
    out = jax.block_until_ready(fwd(x, prepared))

    assert out.shape == (seq, batch, d_model), out.shape
    assert bool(jnp.all(jnp.isfinite(out)))
    print("KERNEL_OK")
</pallas_src>

<mosaic_0001>
module attributes {stable_mosaic.version = 11 : i64} {
  func.func @_qkv_kernel(%arg0: i32, %arg1: i32, %arg2: memref<1x8x32xbf16, #tpu.memory_space<vmem>>, %arg3: memref<32x96xbf16, #tpu.memory_space<vmem>>, %arg4: memref<1x96xf32, #tpu.memory_space<vmem>>, %arg5: memref<1x8x96xbf16, #tpu.memory_space<vmem>>) attributes {dimension_semantics = [#tpu.dimension_semantics<parallel>, #tpu.dimension_semantics<parallel>], iteration_bounds = array<i64: 2, 1>, scalar_prefetch = 0 : i64, scratch_operands = 0 : i64, tpu.core_type = #tpu.core_type<tc>, window_params = [{transform_indices = @transform_0, window_bounds = array<i64: 1, 8, 32>}, {pipeline_mode = #tpu.pipeline_mode<synchronous>, transform_indices = @transform_1, window_bounds = array<i64: 32, 96>}, {pipeline_mode = #tpu.pipeline_mode<synchronous>, transform_indices = @transform_2, window_bounds = array<i64: 1, 96>}, {transform_indices = @transform_3, window_bounds = array<i64: 1, 8, 96>}]} {
    %c0 = arith.constant 0 : index
    %c0_0 = arith.constant 0 : index
    %c0_1 = arith.constant 0 : index
    %0 = vector.load %arg2[%c0, %c0_0, %c0_1] : memref<1x8x32xbf16, #tpu.memory_space<vmem>>, vector<1x8x32xbf16>
    %1 = vector.shape_cast %0 : vector<1x8x32xbf16> to vector<8x32xbf16>
    %c0_2 = arith.constant 0 : index
    %c0_3 = arith.constant 0 : index
    %2 = vector.load %arg3[%c0_2, %c0_3] : memref<32x96xbf16, #tpu.memory_space<vmem>>, vector<32x96xbf16>
    %cst = arith.constant dense<0.000000e+00> : vector<8x96xf32>
    %3 = tpu.matmul %1, %2, %cst {dimension_numbers = #tpu.dot_dimension_numbers<[1], [0], [0], [1], [0, 0, 1, 1], [], []>} : vector<8x32xbf16>, vector<32x96xbf16>, vector<8x96xf32> -> vector<8x96xf32>
    %c0_4 = arith.constant 0 : index
    %c0_5 = arith.constant 0 : index
    %4 = vector.load %arg4[%c0_4, %c0_5] : memref<1x96xf32, #tpu.memory_space<vmem>>, vector<1x96xf32>
    %5 = vector.broadcast %4 : vector<1x96xf32> to vector<8x96xf32>
    %6 = arith.addf %3, %5 : vector<8x96xf32>
    %7 = arith.truncf %6 : vector<8x96xf32> to vector<8x96xbf16>
    %c0_6 = arith.constant 0 : index
    %c0_7 = arith.constant 0 : index
    %c0_8 = arith.constant 0 : index
    %8 = vector.load %arg5[%c0_6, %c0_7, %c0_8] : memref<1x8x96xbf16, #tpu.memory_space<vmem>>, vector<1x8x96xbf16>
    %9 = vector.shape_cast %8 : vector<1x8x96xbf16> to vector<8x96xbf16>
    %10 = vector.shape_cast %7 : vector<8x96xbf16> to vector<1x8x96xbf16>
    tpu.vector_store %arg5[%c0_6, %c0_7, %c0_8], %10 {strides = array<i32>} : memref<1x8x96xbf16, #tpu.memory_space<vmem>>, vector<1x8x96xbf16>,
    return
  }
  func.func @transform_0(%arg0: i32, %arg1: i32) -> (i32, i32, i32) {
    %c0_i32 = arith.constant 0 : i32
    %c0_i32_0 = arith.constant 0 : i32
    return %arg0, %arg1, %c0_i32 : i32, i32, i32
  }
  func.func @transform_1(%arg0: i32, %arg1: i32) -> (i32, i32) {
    %c0_i32 = arith.constant 0 : i32
    %c0_i32_0 = arith.constant 0 : i32
    %c0_i32_1 = arith.constant 0 : i32
    return %c0_i32, %c0_i32_0 : i32, i32
  }
  func.func @transform_2(%arg0: i32, %arg1: i32) -> (i32, i32) {
    %c0_i32 = arith.constant 0 : i32
    %c0_i32_0 = arith.constant 0 : i32
    %c0_i32_1 = arith.constant 0 : i32
    return %c0_i32, %c0_i32_0 : i32, i32
  }
  func.func @transform_3(%arg0: i32, %arg1: i32) -> (i32, i32, i32) {
    %c0_i32 = arith.constant 0 : i32
    %c0_i32_0 = arith.constant 0 : i32
    return %arg0, %arg1, %c0_i32 : i32, i32, i32
  }
}

module attributes {stable_mosaic.version = 11 : i64} {
  func.func @_mha_kernel(%arg0: i32, %arg1: i32, %arg2: memref<1x8x96xbf16, #tpu.memory_space<vmem>>, %arg3: memref<1x8x96xbf16, #tpu.memory_space<vmem>>, %arg4: memref<1x8x32xbf16, #tpu.memory_space<vmem>>) attributes {dimension_semantics = [#tpu.dimension_semantics<parallel>, #tpu.dimension_semantics<parallel>], iteration_bounds = array<i64: 2, 1>, scalar_prefetch = 0 : i64, scratch_operands = 0 : i64, tpu.core_type = #tpu.core_type<tc>, window_params = [{transform_indices = @transform_0, window_bounds = array<i64: 1, 8, 96>}, {transform_indices = @transform_1, window_bounds = array<i64: 1, 8, 96>}, {transform_indices = @transform_2, window_bounds = array<i64: 1, 8, 32>}]} {
    %c0 = arith.constant 0 : index
    %c0_0 = arith.constant 0 : index
    %c0_1 = arith.constant 0 : index
    %0 = vector.load %arg2[%c0, %c0_0, %c0_1] : memref<1x8x96xbf16, #tpu.memory_space<vmem>>, vector<1x8x8xbf16>
    %1 = vector.shape_cast %0 : vector<1x8x8xbf16> to vector<8x8xbf16>
    %2 = arith.extf %1 : vector<8x8xbf16> to vector<8x8xf32>
    %cst = arith.constant 0.353553385 : f32
    %3 = vector.broadcast %cst : f32 to vector<8x8xf32>
    %4 = arith.mulf %2, %3 : vector<8x8xf32>
    %5 = arith.truncf %4 : vector<8x8xf32> to vector<8x8xbf16>
    %c0_2 = arith.constant 0 : index
    %c0_3 = arith.constant 0 : index
    %c32 = arith.constant 32 : index
    %6 = vector.load %arg3[%c0_2, %c0_3, %c32] : memref<1x8x96xbf16, #tpu.memory_space<vmem>>, vector<1x8x8xbf16>
    %7 = vector.shape_cast %6 : vector<1x8x8xbf16> to vector<8x8xbf16>
    %c0_4 = arith.constant 0 : index
    %c0_5 = arith.constant 0 : index
    %c64 = arith.constant 64 : index
    %8 = vector.load %arg3[%c0_4, %c0_5, %c64] : memref<1x8x96xbf16, #tpu.memory_space<vmem>>, vector<1x8x8xbf16>
    %9 = vector.shape_cast %8 : vector<1x8x8xbf16> to vector<8x8xbf16>
    %cst_6 = arith.constant dense<0.000000e+00> : vector<8x8xf32>
    %10 = tpu.matmul %5, %7, %cst_6 {dimension_numbers = #tpu.dot_dimension_numbers<[1], [1], [0], [0], [0, 0, 1, 0], [], []>} : vector<8x8xbf16>, vector<8x8xbf16>, vector<8x8xf32> -> vector<8x8xf32>
    %cst_7 = arith.constant dense<0xFF800000> : vector<8xf32>
    %11 = vector.multi_reduction <maximumf>, %10, %cst_7 [1] : vector<8x8xf32> to vector<8xf32>
    %12 = vector.shape_cast %11 : vector<8xf32> to vector<8x1xf32>
    %13 = vector.broadcast %12 : vector<8x1xf32> to vector<8x8xf32>
    %14 = arith.subf %10, %13 : vector<8x8xf32>
    %15 = math.exp %14 : vector<8x8xf32>
    %cst_8 = arith.constant dense<0.000000e+00> : vector<8xf32>
    %16 = vector.multi_reduction <add>, %15, %cst_8 [1] : vector<8x8xf32> to vector<8xf32>
    %17 = vector.shape_cast %16 : vector<8xf32> to vector<8x1xf32>
    %18 = tpu.reciprocal %17 {approx = true} : vector<8x1xf32> -> vector<8x1xf32>
    %19 = vector.broadcast %18 : vector<8x1xf32> to vector<8x8xf32>
    %20 = arith.mulf %15, %19 : vector<8x8xf32>
    %21 = arith.truncf %20 : vector<8x8xf32> to vector<8x8xbf16>
    %cst_9 = arith.constant dense<0.000000e+00> : vector<8x8xf32>
    %22 = tpu.matmul %21, %9, %cst_9 {dimension_numbers = #tpu.dot_dimension_numbers<[1], [0], [0], [1], [0, 0, 1, 1], [], []>} : vector<8x8xbf16>, vector<8x8xbf16>, vector<8x8xf32> -> vector<8x8xf32>
    %c0_10 = arith.constant 0 : index
    %c0_11 = arith.constant 0 : index
    %c8 = arith.constant 8 : index
    %23 = vector.load %arg2[%c0_10, %c0_11, %c8] : memref<1x8x96xbf16, #tpu.memory_space<vmem>>, vector<1x8x8xbf16>
    %24 = vector.shape_cast %23 : vector<1x8x8xbf16> to vector<8x8xbf16>
    %25 = arith.extf %24 : vector<8x8xbf16> to vector<8x8xf32>
    %cst_12 = arith.constant 0.353553385 : f32
    %26 = vector.broadcast %cst_12 : f32 to vector<8x8xf32>
    %27 = arith.mulf %25, %26 : vector<8x8xf32>
    %28 = arith.truncf %27 : vector<8x8xf32> to vector<8x8xbf16>
    %c0_13 = arith.constant 0 : index
    %c0_14 = arith.constant 0 : index
    %c40 = arith.constant 40 : index
    %29 = vector.load %arg3[%c0_13, %c0_14, %c40] : memref<1x8x96xbf16, #tpu.memory_space<vmem>>, vector<1x8x8xbf16>
    %30 = vector.shape_cast %29 : vector<1x8x8xbf16> to vector<8x8xbf16>
    %c0_15 = arith.constant 0 : index
    %c0_16 = arith.constant 0 : index
    %c72 = arith.constant 72 : index
    %31 = vector.load %arg3[%c0_15, %c0_16, %c72] : memref<1x8x96xbf16, #tpu.memory_space<vmem>>, vector<1x8x8xbf16>
    %32 = vector.shape_cast %31 : vector<1x8x8xbf16> to vector<8x8xbf16>
    %cst_17 = arith.constant dense<0.000000e+00> : vector<8x8xf32>
    %33 = tpu.matmul %28, %30, %cst_17 {dimension_numbers = #tpu.dot_dimension_numbers<[1], [1], [0], [0], [0, 0, 1, 0], [], []>} : vector<8x8xbf16>, vector<8x8xbf16>, vector<8x8xf32> -> vector<8x8xf32>
    %cst_18 = arith.constant dense<0xFF800000> : vector<8xf32>
    %34 = vector.multi_reduction <maximumf>, %33, %cst_18 [1] : vector<8x8xf32> to vector<8xf32>
    %35 = vector.shape_cast %34 : vector<8xf32> to vector<8x1xf32>
    %36 = vector.broadcast %35 : vector<8x1xf32> to vector<8x8xf32>
    %37 = arith.subf %33, %36 : vector<8x8xf32>
    %38 = math.exp %37 : vector<8x8xf32>
    %cst_19 = arith.constant dense<0.000000e+00> : vector<8xf32>
    %39 = vector.multi_reduction <add>, %38, %cst_19 [1] : vector<8x8xf32> to vector<8xf32>
    %40 = vector.shape_cast %39 : vector<8xf32> to vector<8x1xf32>
    %41 = tpu.reciprocal %40 {approx = true} : vector<8x1xf32> -> vector<8x1xf32>
    %42 = vector.broadcast %41 : vector<8x1xf32> to vector<8x8xf32>
    %43 = arith.mulf %38, %42 : vector<8x8xf32>
    %44 = arith.truncf %43 : vector<8x8xf32> to vector<8x8xbf16>
    %cst_20 = arith.constant dense<0.000000e+00> : vector<8x8xf32>
    %45 = tpu.matmul %44, %32, %cst_20 {dimension_numbers = #tpu.dot_dimension_numbers<[1], [0], [0], [1], [0, 0, 1, 1], [], []>} : vector<8x8xbf16>, vector<8x8xbf16>, vector<8x8xf32> -> vector<8x8xf32>
    %c0_21 = arith.constant 0 : index
    %c0_22 = arith.constant 0 : index
    %c16 = arith.constant 16 : index
    %46 = vector.load %arg2[%c0_21, %c0_22, %c16] : memref<1x8x96xbf16, #tpu.memory_space<vmem>>, vector<1x8x8xbf16>
    %47 = vector.shape_cast %46 : vector<1x8x8xbf16> to vector<8x8xbf16>
    %48 = arith.extf %47 : vector<8x8xbf16> to vector<8x8xf32>
    %cst_23 = arith.constant 0.353553385 : f32
    %49 = vector.broadcast %cst_23 : f32 to vector<8x8xf32>
    %50 = arith.mulf %48, %49 : vector<8x8xf32>
    %51 = arith.truncf %50 : vector<8x8xf32> to vector<8x8xbf16>
    %c0_24 = arith.constant 0 : index
    %c0_25 = arith.constant 0 : index
    %c48 = arith.constant 48 : index
    %52 = vector.load %arg3[%c0_24, %c0_25, %c48] : memref<1x8x96xbf16, #tpu.memory_space<vmem>>, vector<1x8x8xbf16>
    %53 = vector.shape_cast %52 : vector<1x8x8xbf16> to vector<8x8xbf16>
    %c0_26 = arith.constant 0 : index
    %c0_27 = arith.constant 0 : index
    %c80 = arith.constant 80 : index
    %54 = vector.load %arg3[%c0_26, %c0_27, %c80] : memref<1x8x96xbf16, #tpu.memory_space<vmem>>, vector<1x8x8xbf16>
    %55 = vector.shape_cast %54 : vector<1x8x8xbf16> to vector<8x8xbf16>
    %cst_28 = arith.constant dense<0.000000e+00> : vector<8x8xf32>
    %56 = tpu.matmul %51, %53, %cst_28 {dimension_numbers = #tpu.dot_dimension_numbers<[1], [1], [0], [0], [0, 0, 1, 0], [], []>} : vector<8x8xbf16>, vector<8x8xbf16>, vector<8x8xf32> -> vector<8x8xf32>
    %cst_29 = arith.constant dense<0xFF800000> : vector<8xf32>
    %57 = vector.multi_reduction <maximumf>, %56, %cst_29 [1] : vector<8x8xf32> to vector<8xf32>
    %58 = vector.shape_cast %57 : vector<8xf32> to vector<8x1xf32>
    %59 = vector.broadcast %58 : vector<8x1xf32> to vector<8x8xf32>
    %60 = arith.subf %56, %59 : vector<8x8xf32>
    %61 = math.exp %60 : vector<8x8xf32>
    %cst_30 = arith.constant dense<0.000000e+00> : vector<8xf32>
    %62 = vector.multi_reduction <add>, %61, %cst_30 [1] : vector<8x8xf32> to vector<8xf32>
    %63 = vector.shape_cast %62 : vector<8xf32> to vector<8x1xf32>
    %64 = tpu.reciprocal %63 {approx = true} : vector<8x1xf32> -> vector<8x1xf32>
    %65 = vector.broadcast %64 : vector<8x1xf32> to vector<8x8xf32>
    %66 = arith.mulf %61, %65 : vector<8x8xf32>
    %67 = arith.truncf %66 : vector<8x8xf32> to vector<8x8xbf16>
    %cst_31 = arith.constant dense<0.000000e+00> : vector<8x8xf32>
    %68 = tpu.matmul %67, %55, %cst_31 {dimension_numbers = #tpu.dot_dimension_numbers<[1], [0], [0], [1], [0, 0, 1, 1], [], []>} : vector<8x8xbf16>, vector<8x8xbf16>, vector<8x8xf32> -> vector<8x8xf32>
    %c0_32 = arith.constant 0 : index
    %c0_33 = arith.constant 0 : index
    %c24 = arith.constant 24 : index
    %69 = vector.load %arg2[%c0_32, %c0_33, %c24] : memref<1x8x96xbf16, #tpu.memory_space<vmem>>, vector<1x8x8xbf16>
    %70 = vector.shape_cast %69 : vector<1x8x8xbf16> to vector<8x8xbf16>
    %71 = arith.extf %70 : vector<8x8xbf16> to vector<8x8xf32>
    %cst_34 = arith.constant 0.353553385 : f32
    %72 = vector.broadcast %cst_34 : f32 to vector<8x8xf32>
    %73 = arith.mulf %71, %72 : vector<8x8xf32>
    %74 = arith.truncf %73 : vector<8x8xf32> to vector<8x8xbf16>
    %c0_35 = arith.constant 0 : index
    %c0_36 = arith.constant 0 : index
    %c56 = arith.constant 56 : index
    %75 = vector.load %arg3[%c0_35, %c0_36, %c56] : memref<1x8x96xbf16, #tpu.memory_space<vmem>>, vector<1x8x8xbf16>
    %76 = vector.shape_cast %75 : vector<1x8x8xbf16> to vector<8x8xbf16>
    %c0_37 = arith.constant 0 : index
    %c0_38 = arith.constant 0 : index
    %c88 = arith.constant 88 : index
    %77 = vector.load %arg3[%c0_37, %c0_38, %c88] : memref<1x8x96xbf16, #tpu.memory_space<vmem>>, vector<1x8x8xbf16>
    %78 = vector.shape_cast %77 : vector<1x8x8xbf16> to vector<8x8xbf16>
    %cst_39 = arith.constant dense<0.000000e+00> : vector<8x8xf32>
    %79 = tpu.matmul %74, %76, %cst_39 {dimension_numbers = #tpu.dot_dimension_numbers<[1], [1], [0], [0], [0, 0, 1, 0], [], []>} : vector<8x8xbf16>, vector<8x8xbf16>, vector<8x8xf32> -> vector<8x8xf32>
    %cst_40 = arith.constant dense<0xFF800000> : vector<8xf32>
    %80 = vector.multi_reduction <maximumf>, %79, %cst_40 [1] : vector<8x8xf32> to vector<8xf32>
    %81 = vector.shape_cast %80 : vector<8xf32> to vector<8x1xf32>
    %82 = vector.broadcast %81 : vector<8x1xf32> to vector<8x8xf32>
    %83 = arith.subf %79, %82 : vector<8x8xf32>
    %84 = math.exp %83 : vector<8x8xf32>
    %cst_41 = arith.constant dense<0.000000e+00> : vector<8xf32>
    %85 = vector.multi_reduction <add>, %84, %cst_41 [1] : vector<8x8xf32> to vector<8xf32>
    %86 = vector.shape_cast %85 : vector<8xf32> to vector<8x1xf32>
    %87 = tpu.reciprocal %86 {approx = true} : vector<8x1xf32> -> vector<8x1xf32>
    %88 = vector.broadcast %87 : vector<8x1xf32> to vector<8x8xf32>
    %89 = arith.mulf %84, %88 : vector<8x8xf32>
    %90 = arith.truncf %89 : vector<8x8xf32> to vector<8x8xbf16>
    %cst_42 = arith.constant dense<0.000000e+00> : vector<8x8xf32>
    %91 = tpu.matmul %90, %78, %cst_42 {dimension_numbers = #tpu.dot_dimension_numbers<[1], [0], [0], [1], [0, 0, 1, 1], [], []>} : vector<8x8xbf16>, vector<8x8xbf16>, vector<8x8xf32> -> vector<8x8xf32>
    %92 = tpu.concatenate %22, %45, %68, %91 in 1 : vector<8x8xf32>, vector<8x8xf32>, vector<8x8xf32>, vector<8x8xf32> -> vector<8x32xf32>
    %93 = arith.truncf %92 : vector<8x32xf32> to vector<8x32xbf16>
    %c0_43 = arith.constant 0 : index
    %c0_44 = arith.constant 0 : index
    %c0_45 = arith.constant 0 : index
    %94 = vector.load %arg4[%c0_43, %c0_44, %c0_45] : memref<1x8x32xbf16, #tpu.memory_space<vmem>>, vector<1x8x32xbf16>
    %95 = vector.shape_cast %94 : vector<1x8x32xbf16> to vector<8x32xbf16>
    %96 = vector.shape_cast %93 : vector<8x32xbf16> to vector<1x8x32xbf16>
    tpu.vector_store %arg4[%c0_43, %c0_44, %c0_45], %96 {strides = array<i32>} : memref<1x8x32xbf16, #tpu.memory_space<vmem>>, vector<1x8x32xbf16>,
    return
  }
  func.func @transform_0(%arg0: i32, %arg1: i32) -> (i32, i32, i32) {
    %c0_i32 = arith.constant 0 : i32
    %c0_i32_0 = arith.constant 0 : i32
    return %arg0, %arg1, %c0_i32 : i32, i32, i32
  }
  func.func @transform_1(%arg0: i32, %arg1: i32) -> (i32, i32, i32) {
    %c0_i32 = arith.constant 0 : i32
    %c0_i32_0 = arith.constant 0 : i32
    %c0_i32_1 = arith.constant 0 : i32
    return %arg0, %c0_i32, %c0_i32_0 : i32, i32, i32
  }
  func.func @transform_2(%arg0: i32, %arg1: i32) -> (i32, i32, i32) {
    %c0_i32 = arith.constant 0 : i32
    %c0_i32_0 = arith.constant 0 : i32
    return %arg0, %arg1, %c0_i32 : i32, i32, i32
  }
}

module attributes {stable_mosaic.version = 11 : i64} {
  func.func @_embed_pe_kernel(%arg0: i32, %arg1: i32, %arg2: memref<1x8x16xf32, #tpu.memory_space<vmem>>, %arg3: memref<16x32xbf16, #tpu.memory_space<vmem>>, %arg4: memref<1x32xf32, #tpu.memory_space<vmem>>, %arg5: memref<8x32xf32, #tpu.memory_space<vmem>>, %arg6: memref<1x8x32xbf16, #tpu.memory_space<vmem>>) attributes {dimension_semantics = [#tpu.dimension_semantics<parallel>, #tpu.dimension_semantics<parallel>], iteration_bounds = array<i64: 2, 1>, scalar_prefetch = 0 : i64, scratch_operands = 0 : i64, tpu.core_type = #tpu.core_type<tc>, window_params = [{transform_indices = @transform_0, window_bounds = array<i64: 1, 8, 16>}, {pipeline_mode = #tpu.pipeline_mode<synchronous>, transform_indices = @transform_1, window_bounds = array<i64: 16, 32>}, {pipeline_mode = #tpu.pipeline_mode<synchronous>, transform_indices = @transform_2, window_bounds = array<i64: 1, 32>}, {transform_indices = @transform_3, window_bounds = array<i64: 8, 32>}, {transform_indices = @transform_4, window_bounds = array<i64: 1, 8, 32>}]} {
    %c0 = arith.constant 0 : index
    %c0_0 = arith.constant 0 : index
    %c0_1 = arith.constant 0 : index
    %0 = vector.load %arg2[%c0, %c0_0, %c0_1] : memref<1x8x16xf32, #tpu.memory_space<vmem>>, vector<1x8x16xf32>
    %1 = vector.shape_cast %0 : vector<1x8x16xf32> to vector<8x16xf32>
    %2 = arith.truncf %1 : vector<8x16xf32> to vector<8x16xbf16>
    %c0_2 = arith.constant 0 : index
    %c0_3 = arith.constant 0 : index
    %3 = vector.load %arg3[%c0_2, %c0_3] : memref<16x32xbf16, #tpu.memory_space<vmem>>, vector<16x32xbf16>
    %cst = arith.constant dense<0.000000e+00> : vector<8x32xf32>
    %4 = tpu.matmul %2, %3, %cst {dimension_numbers = #tpu.dot_dimension_numbers<[1], [0], [0], [1], [0, 0, 1, 1], [], []>} : vector<8x16xbf16>, vector<16x32xbf16>, vector<8x32xf32> -> vector<8x32xf32>
    %c0_4 = arith.constant 0 : index
    %c0_5 = arith.constant 0 : index
    %5 = vector.load %arg4[%c0_4, %c0_5] : memref<1x32xf32, #tpu.memory_space<vmem>>, vector<1x32xf32>
    %6 = vector.broadcast %5 : vector<1x32xf32> to vector<8x32xf32>
    %7 = arith.addf %4, %6 : vector<8x32xf32>
    %c0_6 = arith.constant 0 : index
    %c0_7 = arith.constant 0 : index
    %8 = vector.load %arg5[%c0_6, %c0_7] : memref<8x32xf32, #tpu.memory_space<vmem>>, vector<8x32xf32>
    %9 = arith.addf %7, %8 : vector<8x32xf32>
    %10 = arith.truncf %9 : vector<8x32xf32> to vector<8x32xbf16>
    %c0_8 = arith.constant 0 : index
    %c0_9 = arith.constant 0 : index
    %c0_10 = arith.constant 0 : index
    %11 = vector.load %arg6[%c0_8, %c0_9, %c0_10] : memref<1x8x32xbf16, #tpu.memory_space<vmem>>, vector<1x8x32xbf16>
    %12 = vector.shape_cast %11 : vector<1x8x32xbf16> to vector<8x32xbf16>
    %13 = vector.shape_cast %10 : vector<8x32xbf16> to vector<1x8x32xbf16>
    tpu.vector_store %arg6[%c0_8, %c0_9, %c0_10], %13 {strides = array<i32>} : memref<1x8x32xbf16, #tpu.memory_space<vmem>>, vector<1x8x32xbf16>,
    return
  }
  func.func @transform_0(%arg0: i32, %arg1: i32) -> (i32, i32, i32) {
    %c0_i32 = arith.constant 0 : i32
    %c0_i32_0 = arith.constant 0 : i32
    return %arg0, %arg1, %c0_i32 : i32, i32, i32
  }
  func.func @transform_1(%arg0: i32, %arg1: i32) -> (i32, i32) {
    %c0_i32 = arith.constant 0 : i32
    %c0_i32_0 = arith.constant 0 : i32
    %c0_i32_1 = arith.constant 0 : i32
    return %c0_i32, %c0_i32_0 : i32, i32
  }
  func.func @transform_2(%arg0: i32, %arg1: i32) -> (i32, i32) {
    %c0_i32 = arith.constant 0 : i32
    %c0_i32_0 = arith.constant 0 : i32
    %c0_i32_1 = arith.constant 0 : i32
    return %c0_i32, %c0_i32_0 : i32, i32
  }
  func.func @transform_3(%arg0: i32, %arg1: i32) -> (i32, i32) {
    %c0_i32 = arith.constant 0 : i32
    %c0_i32_0 = arith.constant 0 : i32
    return %arg1, %c0_i32 : i32, i32
  }
  func.func @transform_4(%arg0: i32, %arg1: i32) -> (i32, i32, i32) {
    %c0_i32 = arith.constant 0 : i32
    %c0_i32_0 = arith.constant 0 : i32
    return %arg0, %arg1, %c0_i32 : i32, i32, i32
  }
}

module attributes {stable_mosaic.version = 11 : i64} {
  func.func @_proj_res_ln_kernel(%arg0: i32, %arg1: i32, %arg2: memref<1x8x32xbf16, #tpu.memory_space<vmem>>, %arg3: memref<32x32xbf16, #tpu.memory_space<vmem>>, %arg4: memref<1x32xf32, #tpu.memory_space<vmem>>, %arg5: memref<1x8x32xbf16, #tpu.memory_space<vmem>>, %arg6: memref<1x32xf32, #tpu.memory_space<vmem>>, %arg7: memref<1x32xf32, #tpu.memory_space<vmem>>, %arg8: memref<1x8x32xbf16, #tpu.memory_space<vmem>>) attributes {dimension_semantics = [#tpu.dimension_semantics<parallel>, #tpu.dimension_semantics<parallel>], iteration_bounds = array<i64: 2, 1>, scalar_prefetch = 0 : i64, scratch_operands = 0 : i64, tpu.core_type = #tpu.core_type<tc>, window_params = [{transform_indices = @transform_0, window_bounds = array<i64: 1, 8, 32>}, {pipeline_mode = #tpu.pipeline_mode<synchronous>, transform_indices = @transform_1, window_bounds = array<i64: 32, 32>}, {pipeline_mode = #tpu.pipeline_mode<synchronous>, transform_indices = @transform_2, window_bounds = array<i64: 1, 32>}, {transform_indices = @transform_3, window_bounds = array<i64: 1, 8, 32>}, {pipeline_mode = #tpu.pipeline_mode<synchronous>, transform_indices = @transform_4, window_bounds = array<i64: 1, 32>}, {pipeline_mode = #tpu.pipeline_mode<synchronous>, transform_indices = @transform_5, window_bounds = array<i64: 1, 32>}, {transform_indices = @transform_6, window_bounds = array<i64: 1, 8, 32>}]} {
    %c0 = arith.constant 0 : index
    %c0_0 = arith.constant 0 : index
    %c0_1 = arith.constant 0 : index
    %0 = vector.load %arg2[%c0, %c0_0, %c0_1] : memref<1x8x32xbf16, #tpu.memory_space<vmem>>, vector<1x8x32xbf16>
    %1 = vector.shape_cast %0 : vector<1x8x32xbf16> to vector<8x32xbf16>
    %c0_2 = arith.constant 0 : index
    %c0_3 = arith.constant 0 : index
    %2 = vector.load %arg3[%c0_2, %c0_3] : memref<32x32xbf16, #tpu.memory_space<vmem>>, vector<32x32xbf16>
    %cst = arith.constant dense<0.000000e+00> : vector<8x32xf32>
    %3 = tpu.matmul %1, %2, %cst {dimension_numbers = #tpu.dot_dimension_numbers<[1], [0], [0], [1], [0, 0, 1, 1], [], []>} : vector<8x32xbf16>, vector<32x32xbf16>, vector<8x32xf32> -> vector<8x32xf32>
    %c0_4 = arith.constant 0 : index
    %c0_5 = arith.constant 0 : index
    %4 = vector.load %arg4[%c0_4, %c0_5] : memref<1x32xf32, #tpu.memory_space<vmem>>, vector<1x32xf32>
    %5 = vector.broadcast %4 : vector<1x32xf32> to vector<8x32xf32>
    %6 = arith.addf %3, %5 : vector<8x32xf32>
    %c0_6 = arith.constant 0 : index
    %c0_7 = arith.constant 0 : index
    %c0_8 = arith.constant 0 : index
    %7 = vector.load %arg5[%c0_6, %c0_7, %c0_8] : memref<1x8x32xbf16, #tpu.memory_space<vmem>>, vector<1x8x32xbf16>
    %8 = vector.shape_cast %7 : vector<1x8x32xbf16> to vector<8x32xbf16>
    %9 = arith.extf %8 : vector<8x32xbf16> to vector<8x32xf32>
    %10 = arith.addf %9, %6 : vector<8x32xf32>
    %cst_9 = arith.constant dense<0.000000e+00> : vector<8xf32>
    %11 = vector.multi_reduction <add>, %10, %cst_9 [1] : vector<8x32xf32> to vector<8xf32>
    %12 = vector.shape_cast %11 : vector<8xf32> to vector<8x1xf32>
    %cst_10 = arith.constant 3.200000e+01 : f32
    %13 = vector.broadcast %cst_10 : f32 to vector<8x1xf32>
    %14 = arith.divf %12, %13 : vector<8x1xf32>
    %15 = vector.broadcast %14 : vector<8x1xf32> to vector<8x32xf32>
    %16 = arith.subf %10, %15 : vector<8x32xf32>
    %17 = vector.broadcast %14 : vector<8x1xf32> to vector<8x32xf32>
    %18 = arith.subf %10, %17 : vector<8x32xf32>
    %19 = arith.mulf %16, %18 : vector<8x32xf32>
    %cst_11 = arith.constant dense<0.000000e+00> : vector<8xf32>
    %20 = vector.multi_reduction <add>, %19, %cst_11 [1] : vector<8x32xf32> to vector<8xf32>
    %21 = vector.shape_cast %20 : vector<8xf32> to vector<8x1xf32>
    %cst_12 = arith.constant 3.200000e+01 : f32
    %22 = vector.broadcast %cst_12 : f32 to vector<8x1xf32>
    %23 = arith.divf %21, %22 : vector<8x1xf32>
    %24 = vector.broadcast %14 : vector<8x1xf32> to vector<8x32xf32>
    %25 = arith.subf %10, %24 : vector<8x32xf32>
    %cst_13 = arith.constant 9.99999974E-6 : f32
    %26 = vector.broadcast %cst_13 : f32 to vector<8x1xf32>
    %27 = arith.addf %23, %26 : vector<8x1xf32>
    %28 = math.rsqrt %27 : vector<8x1xf32>
    %29 = vector.broadcast %28 : vector<8x1xf32> to vector<8x32xf32>
    %30 = arith.mulf %25, %29 : vector<8x32xf32>
    %c0_14 = arith.constant 0 : index
    %c0_15 = arith.constant 0 : index
    %31 = vector.load %arg6[%c0_14, %c0_15] : memref<1x32xf32, #tpu.memory_space<vmem>>, vector<1x32xf32>
    %32 = vector.broadcast %31 : vector<1x32xf32> to vector<8x32xf32>
    %33 = arith.mulf %30, %32 : vector<8x32xf32>
    %c0_16 = arith.constant 0 : index
    %c0_17 = arith.constant 0 : index
    %34 = vector.load %arg7[%c0_16, %c0_17] : memref<1x32xf32, #tpu.memory_space<vmem>>, vector<1x32xf32>
    %35 = vector.broadcast %34 : vector<1x32xf32> to vector<8x32xf32>
    %36 = arith.addf %33, %35 : vector<8x32xf32>
    %37 = arith.truncf %36 : vector<8x32xf32> to vector<8x32xbf16>
    %c0_18 = arith.constant 0 : index
    %c0_19 = arith.constant 0 : index
    %c0_20 = arith.constant 0 : index
    %38 = vector.load %arg8[%c0_18, %c0_19, %c0_20] : memref<1x8x32xbf16, #tpu.memory_space<vmem>>, vector<1x8x32xbf16>
    %39 = vector.shape_cast %38 : vector<1x8x32xbf16> to vector<8x32xbf16>
    %40 = vector.shape_cast %37 : vector<8x32xbf16> to vector<1x8x32xbf16>
    tpu.vector_store %arg8[%c0_18, %c0_19, %c0_20], %40 {strides = array<i32>} : memref<1x8x32xbf16, #tpu.memory_space<vmem>>, vector<1x8x32xbf16>,
    return
  }
  func.func @transform_0(%arg0: i32, %arg1: i32) -> (i32, i32, i32) {
    %c0_i32 = arith.constant 0 : i32
    %c0_i32_0 = arith.constant 0 : i32
    return %arg0, %arg1, %c0_i32 : i32, i32, i32
  }
  func.func @transform_1(%arg0: i32, %arg1: i32) -> (i32, i32) {
    %c0_i32 = arith.constant 0 : i32
    %c0_i32_0 = arith.constant 0 : i32
    %c0_i32_1 = arith.constant 0 : i32
    return %c0_i32, %c0_i32_0 : i32, i32
  }
  func.func @transform_2(%arg0: i32, %arg1: i32) -> (i32, i32) {
    %c0_i32 = arith.constant 0 : i32
    %c0_i32_0 = arith.constant 0 : i32
    %c0_i32_1 = arith.constant 0 : i32
    return %c0_i32, %c0_i32_0 : i32, i32
  }
  func.func @transform_3(%arg0: i32, %arg1: i32) -> (i32, i32, i32) {
    %c0_i32 = arith.constant 0 : i32
    %c0_i32_0 = arith.constant 0 : i32
    return %arg0, %arg1, %c0_i32 : i32, i32, i32
  }
  func.func @transform_4(%arg0: i32, %arg1: i32) -> (i32, i32) {
    %c0_i32 = arith.constant 0 : i32
    %c0_i32_0 = arith.constant 0 : i32
    %c0_i32_1 = arith.constant 0 : i32
    return %c0_i32, %c0_i32_0 : i32, i32
  }
  func.func @transform_5(%arg0: i32, %arg1: i32) -> (i32, i32) {
    %c0_i32 = arith.constant 0 : i32
    %c0_i32_0 = arith.constant 0 : i32
    %c0_i32_1 = arith.constant 0 : i32
    return %c0_i32, %c0_i32_0 : i32, i32
  }
  func.func @transform_6(%arg0: i32, %arg1: i32) -> (i32, i32, i32) {
    %c0_i32 = arith.constant 0 : i32
    %c0_i32_0 = arith.constant 0 : i32
    return %arg0, %arg1, %c0_i32 : i32, i32, i32
  }
}

module attributes {stable_mosaic.version = 11 : i64} {
  func.func @_ffn_res_ln_kernel(%arg0: i32, %arg1: i32, %arg2: memref<1x8x32xbf16, #tpu.memory_space<vmem>>, %arg3: memref<32x64xbf16, #tpu.memory_space<vmem>>, %arg4: memref<1x64xf32, #tpu.memory_space<vmem>>, %arg5: memref<64x32xbf16, #tpu.memory_space<vmem>>, %arg6: memref<1x32xf32, #tpu.memory_space<vmem>>, %arg7: memref<1x32xf32, #tpu.memory_space<vmem>>, %arg8: memref<1x32xf32, #tpu.memory_space<vmem>>, %arg9: memref<1x8x32xbf16, #tpu.memory_space<vmem>>) attributes {dimension_semantics = [#tpu.dimension_semantics<parallel>, #tpu.dimension_semantics<parallel>], iteration_bounds = array<i64: 2, 1>, scalar_prefetch = 0 : i64, scratch_operands = 0 : i64, tpu.core_type = #tpu.core_type<tc>, window_params = [{transform_indices = @transform_0, window_bounds = array<i64: 1, 8, 32>}, {pipeline_mode = #tpu.pipeline_mode<synchronous>, transform_indices = @transform_1, window_bounds = array<i64: 32, 64>}, {pipeline_mode = #tpu.pipeline_mode<synchronous>, transform_indices = @transform_2, window_bounds = array<i64: 1, 64>}, {pipeline_mode = #tpu.pipeline_mode<synchronous>, transform_indices = @transform_3, window_bounds = array<i64: 64, 32>}, {pipeline_mode = #tpu.pipeline_mode<synchronous>, transform_indices = @transform_4, window_bounds = array<i64: 1, 32>}, {pipeline_mode = #tpu.pipeline_mode<synchronous>, transform_indices = @transform_5, window_bounds = array<i64: 1, 32>}, {pipeline_mode = #tpu.pipeline_mode<synchronous>, transform_indices = @transform_6, window_bounds = array<i64: 1, 32>}, {transform_indices = @transform_7, window_bounds = array<i64: 1, 8, 32>}]} {
    %c0 = arith.constant 0 : index
    %c0_0 = arith.constant 0 : index
    %c0_1 = arith.constant 0 : index
    %0 = vector.load %arg2[%c0, %c0_0, %c0_1] : memref<1x8x32xbf16, #tpu.memory_space<vmem>>, vector<1x8x32xbf16>
    %1 = vector.shape_cast %0 : vector<1x8x32xbf16> to vector<8x32xbf16>
    %c0_2 = arith.constant 0 : index
    %c0_3 = arith.constant 0 : index
    %2 = vector.load %arg3[%c0_2, %c0_3] : memref<32x64xbf16, #tpu.memory_space<vmem>>, vector<32x64xbf16>
    %cst = arith.constant dense<0.000000e+00> : vector<8x64xf32>
    %3 = tpu.matmul %1, %2, %cst {dimension_numbers = #tpu.dot_dimension_numbers<[1], [0], [0], [1], [0, 0, 1, 1], [], []>} : vector<8x32xbf16>, vector<32x64xbf16>, vector<8x64xf32> -> vector<8x64xf32>
    %c0_4 = arith.constant 0 : index
    %c0_5 = arith.constant 0 : index
    %4 = vector.load %arg4[%c0_4, %c0_5] : memref<1x64xf32, #tpu.memory_space<vmem>>, vector<1x64xf32>
    %5 = vector.broadcast %4 : vector<1x64xf32> to vector<8x64xf32>
    %6 = arith.addf %3, %5 : vector<8x64xf32>
    %cst_6 = arith.constant 0.000000e+00 : f32
    %7 = vector.broadcast %cst_6 : f32 to vector<8x64xf32>
    %8 = arith.maximumf %6, %7 : vector<8x64xf32>
    %9 = arith.truncf %8 : vector<8x64xf32> to vector<8x64xbf16>
    %c0_7 = arith.constant 0 : index
    %c0_8 = arith.constant 0 : index
    %10 = vector.load %arg5[%c0_7, %c0_8] : memref<64x32xbf16, #tpu.memory_space<vmem>>, vector<64x32xbf16>
    %cst_9 = arith.constant dense<0.000000e+00> : vector<8x32xf32>
    %11 = tpu.matmul %9, %10, %cst_9 {dimension_numbers = #tpu.dot_dimension_numbers<[1], [0], [0], [1], [0, 0, 1, 1], [], []>} : vector<8x64xbf16>, vector<64x32xbf16>, vector<8x32xf32> -> vector<8x32xf32>
    %c0_10 = arith.constant 0 : index
    %c0_11 = arith.constant 0 : index
    %12 = vector.load %arg6[%c0_10, %c0_11] : memref<1x32xf32, #tpu.memory_space<vmem>>, vector<1x32xf32>
    %13 = vector.broadcast %12 : vector<1x32xf32> to vector<8x32xf32>
    %14 = arith.addf %11, %13 : vector<8x32xf32>
    %15 = arith.extf %1 : vector<8x32xbf16> to vector<8x32xf32>
    %16 = arith.addf %15, %14 : vector<8x32xf32>
    %cst_12 = arith.constant dense<0.000000e+00> : vector<8xf32>
    %17 = vector.multi_reduction <add>, %16, %cst_12 [1] : vector<8x32xf32> to vector<8xf32>
    %18 = vector.shape_cast %17 : vector<8xf32> to vector<8x1xf32>
    %cst_13 = arith.constant 3.200000e+01 : f32
    %19 = vector.broadcast %cst_13 : f32 to vector<8x1xf32>
    %20 = arith.divf %18, %19 : vector<8x1xf32>
    %21 = vector.broadcast %20 : vector<8x1xf32> to vector<8x32xf32>
    %22 = arith.subf %16, %21 : vector<8x32xf32>
    %23 = vector.broadcast %20 : vector<8x1xf32> to vector<8x32xf32>
    %24 = arith.subf %16, %23 : vector<8x32xf32>
    %25 = arith.mulf %22, %24 : vector<8x32xf32>
    %cst_14 = arith.constant dense<0.000000e+00> : vector<8xf32>
    %26 = vector.multi_reduction <add>, %25, %cst_14 [1] : vector<8x32xf32> to vector<8xf32>
    %27 = vector.shape_cast %26 : vector<8xf32> to vector<8x1xf32>
    %cst_15 = arith.constant 3.200000e+01 : f32
    %28 = vector.broadcast %cst_15 : f32 to vector<8x1xf32>
    %29 = arith.divf %27, %28 : vector<8x1xf32>
    %30 = vector.broadcast %20 : vector<8x1xf32> to vector<8x32xf32>
    %31 = arith.subf %16, %30 : vector<8x32xf32>
    %cst_16 = arith.constant 9.99999974E-6 : f32
    %32 = vector.broadcast %cst_16 : f32 to vector<8x1xf32>
    %33 = arith.addf %29, %32 : vector<8x1xf32>
    %34 = math.rsqrt %33 : vector<8x1xf32>
    %35 = vector.broadcast %34 : vector<8x1xf32> to vector<8x32xf32>
    %36 = arith.mulf %31, %35 : vector<8x32xf32>
    %c0_17 = arith.constant 0 : index
    %c0_18 = arith.constant 0 : index
    %37 = vector.load %arg7[%c0_17, %c0_18] : memref<1x32xf32, #tpu.memory_space<vmem>>, vector<1x32xf32>
    %38 = vector.broadcast %37 : vector<1x32xf32> to vector<8x32xf32>
    %39 = arith.mulf %36, %38 : vector<8x32xf32>
    %c0_19 = arith.constant 0 : index
    %c0_20 = arith.constant 0 : index
    %40 = vector.load %arg8[%c0_19, %c0_20] : memref<1x32xf32, #tpu.memory_space<vmem>>, vector<1x32xf32>
    %41 = vector.broadcast %40 : vector<1x32xf32> to vector<8x32xf32>
    %42 = arith.addf %39, %41 : vector<8x32xf32>
    %43 = arith.truncf %42 : vector<8x32xf32> to vector<8x32xbf16>
    %c0_21 = arith.constant 0 : index
    %c0_22 = arith.constant 0 : index
    %c0_23 = arith.constant 0 : index
    %44 = vector.load %arg9[%c0_21, %c0_22, %c0_23] : memref<1x8x32xbf16, #tpu.memory_space<vmem>>, vector<1x8x32xbf16>
    %45 = vector.shape_cast %44 : vector<1x8x32xbf16> to vector<8x32xbf16>
    %46 = vector.shape_cast %43 : vector<8x32xbf16> to vector<1x8x32xbf16>
    tpu.vector_store %arg9[%c0_21, %c0_22, %c0_23], %46 {strides = array<i32>} : memref<1x8x32xbf16, #tpu.memory_space<vmem>>, vector<1x8x32xbf16>,
    return
  }
  func.func @transform_0(%arg0: i32, %arg1: i32) -> (i32, i32, i32) {
    %c0_i32 = arith.constant 0 : i32
    %c0_i32_0 = arith.constant 0 : i32
    return %arg0, %arg1, %c0_i32 : i32, i32, i32
  }
  func.func @transform_1(%arg0: i32, %arg1: i32) -> (i32, i32) {
    %c0_i32 = arith.constant 0 : i32
    %c0_i32_0 = arith.constant 0 : i32
    %c0_i32_1 = arith.constant 0 : i32
    return %c0_i32, %c0_i32_0 : i32, i32
  }
  func.func @transform_2(%arg0: i32, %arg1: i32) -> (i32, i32) {
    %c0_i32 = arith.constant 0 : i32
    %c0_i32_0 = arith.constant 0 : i32
    %c0_i32_1 = arith.constant 0 : i32
    return %c0_i32, %c0_i32_0 : i32, i32
  }
  func.func @transform_3(%arg0: i32, %arg1: i32) -> (i32, i32) {
    %c0_i32 = arith.constant 0 : i32
    %c0_i32_0 = arith.constant 0 : i32
    %c0_i32_1 = arith.constant 0 : i32
    return %c0_i32, %c0_i32_0 : i32, i32
  }
  func.func @transform_4(%arg0: i32, %arg1: i32) -> (i32, i32) {
    %c0_i32 = arith.constant 0 : i32
    %c0_i32_0 = arith.constant 0 : i32
    %c0_i32_1 = arith.constant 0 : i32
    return %c0_i32, %c0_i32_0 : i32, i32
  }
  func.func @transform_5(%arg0: i32, %arg1: i32) -> (i32, i32) {
    %c0_i32 = arith.constant 0 : i32
    %c0_i32_0 = arith.constant 0 : i32
    %c0_i32_1 = arith.constant 0 : i32
    return %c0_i32, %c0_i32_0 : i32, i32
  }
  func.func @transform_6(%arg0: i32, %arg1: i32) -> (i32, i32) {
    %c0_i32 = arith.constant 0 : i32
    %c0_i32_0 = arith.constant 0 : i32
    %c0_i32_1 = arith.constant 0 : i32
    return %c0_i32, %c0_i32_0 : i32, i32
  }
  func.func @transform_7(%arg0: i32, %arg1: i32) -> (i32, i32, i32) {
    %c0_i32 = arith.constant 0 : i32
    %c0_i32_0 = arith.constant 0 : i32
    return %arg0, %arg1, %c0_i32 : i32, i32, i32
  }
}

</mosaic_0001>

<llo_original>
// kernel: transformer_encoder.9
$region0: #{transformer_encoder.9}
  #allocation0 [shape = 'u32[]', space=smem, size = 0x4, offset = 0x4, fixed_abs, tag = 'smem constant byte address 0x4 - core index']
  #allocation1 [shape = 'u32[144,128]{1,0:T(1,128)}', space=vmem, size = 0x12000, scoped, tag = 'internal scratch']
  %s0 = inlined_call_operand.vmem [shape: f32[2,8,16], index: 0, kind: input, shape index: {}]
  %s1 = inlined_call_operand.vmem [shape: bf16[16,32], index: 1, kind: input, shape index: {}]
  %s2 = inlined_call_operand.vmem [shape: f32[1,32], index: 2, kind: input, shape index: {}]
  %s3 = inlined_call_operand.vmem [shape: f32[8,32], index: 3, kind: input, shape index: {}]
  %s4 = inlined_call_operand.vmem [shape: bf16[2,8,32], index: 4, kind: output, shape index: {}]
  %s5 = sld [smem:[#allocation0]]
  $region49: #{transformer_encoder.9} parent=0
    _
  %s7 = ssub.s32 1, %s5
  %s8 = scalar_select 0, %s7, %s5
  loop: start=0, step=1, limit=4
  $region2: #{transformer_encoder.9} parent=0 // loop_pre_header
    _
  $region3: #{transformer_encoder.9} parent=0 // loop_header
    %s10 = sphi 0, %s14
    %p11 = scmp.ge.s32.totalorder %s10, 4
    %s17 = sphi 0, %s29
    %s18 = sphi 0, %s25
    %s19 = sphi 0, %s17
    %s20 = sphi 0, %s18
    %s21 = sphi 0, %s19
    %s22 = sphi 0, %s20
    %s34 = sphi 0, %s36
    %s37 = sphi 0, %s34
    %s38 = sphi 0, %s37
    %s54 = sphi 0, %s38
    %s58 = sphi 0, %s58
    %s60 = sphi 0, %s58
    %s61 = sphi 0, %s60
    %s75 = sphi 0, %s61
    %s79 = sphi 0, %s79
    %s81 = sphi 0, %s79
    %s82 = sphi 0, %s81
    %s96 = sphi 0, %s82
    %s102 = sphi 0, %s104
    %s105 = sphi 0, %s102
    %s106 = sphi 0, %s105
    %s122 = sphi 0, %s106
    %s130 = sphi 0, %s132
    %s133 = sphi 0, %s130
    %s134 = sphi 0, %s133
    %s150 = sphi 0, %s134
  $region4: #{transformer_encoder.9} parent=0 // loop_header_branch
    %13 = sbr.rel (%p11) target = $region8
  $region5: #{transformer_encoder.9} parent=0 // loop_body
    %s15 = ssub.s32 %s10, 1
    %s16 = ssub.s32 %s10, 2
    %s23 = sadd.s32 1, %s18
    %p24 = scmp.ge.s32.totalorder %s23, 1
    %s25 = scalar_select %p24, 0, %s23
    %s26 = sadd.s32 1, %s17
    %s27 = scalar_select %p24, %s26, %s17
    %p28 = scmp.ge.s32.totalorder %s27, 2
    %s29 = scalar_select %p28, 0, %s27
    %s30 = ssub.s32 %s17, %s29
    %s31 = ssub.s32 %s18, %s25
    %s32 = sor.u32 %s30, %s31
    %p33 = scmp.eq.s32.totalorder %s32, 0
    %s35 = sadd.s32 %s34, 1
    %s36 = scalar_select %p33, %s34, %s35
    %p39 = pneg %p33
    %p40 = scmp.eq.s32.totalorder %s10, 1
    %p41 = por %p39, %p40
    %p42 = scmp.ne.s32.totalorder %s34, %s37
    %p43 = scmp.eq.s32.totalorder %s10, 0
    %p44 = por %p42, %p43
    %p45 = scmp.ne.s32.totalorder %s34, %s37
    %p46 = scmp.eq.s32.totalorder %s15, 1
    %p47 = por %p45, %p46
    %p48 = scmp.ne.s32.totalorder %s37, %s38
    %p49 = scmp.eq.s32.totalorder %s15, 0
    %p50 = por %p48, %p49
    %p51 = scmp.ne.s32.totalorder %s37, %s38
    %p52 = scmp.eq.s32.totalorder %s16, 1
    %p53 = por %p51, %p52
    %p55 = scmp.ne.s32.totalorder %s38, %s54
    %p56 = scmp.eq.s32.totalorder %s16, 0
    %p57 = por %p55, %p56
    %s59 = sadd.s32 %s58, 1
    %p62 = scmp.eq.s32.totalorder %s10, 1
    %p63 = scmp.ne.s32.totalorder %s58, %s60
    %p64 = scmp.eq.s32.totalorder %s10, 0
    %p65 = por %p63, %p64
    %p66 = scmp.ne.s32.totalorder %s58, %s60
    %p67 = scmp.eq.s32.totalorder %s15, 1
    %p68 = por %p66, %p67
    %p69 = scmp.ne.s32.totalorder %s60, %s61
    %p70 = scmp.eq.s32.totalorder %s15, 0
    %p71 = por %p69, %p70
    %p72 = scmp.ne.s32.totalorder %s60, %s61
    %p73 = scmp.eq.s32.totalorder %s16, 1
    %p74 = por %p72, %p73
    %p76 = scmp.ne.s32.totalorder %s61, %s75
    %p77 = scmp.eq.s32.totalorder %s16, 0
    %p78 = por %p76, %p77
    %s80 = sadd.s32 %s79, 1
    %p83 = scmp.eq.s32.totalorder %s10, 1
    %p84 = scmp.ne.s32.totalorder %s79, %s81
    %p85 = scmp.eq.s32.totalorder %s10, 0
    %p86 = por %p84, %p85
    %p87 = scmp.ne.s32.totalorder %s79, %s81
    %p88 = scmp.eq.s32.totalorder %s15, 1
    %p89 = por %p87, %p88
    %p90 = scmp.ne.s32.totalorder %s81, %s82
    %p91 = scmp.eq.s32.totalorder %s15, 0
    %p92 = por %p90, %p91
    %p93 = scmp.ne.s32.totalorder %s81, %s82
    %p94 = scmp.eq.s32.totalorder %s16, 1
    %p95 = por %p93, %p94
    %p97 = scmp.ne.s32.totalorder %s82, %s96
    %p98 = scmp.eq.s32.totalorder %s16, 0
    %p99 = por %p97, %p98
    %s100 = ssub.s32 %s18, %s25
    %p101 = scmp.eq.s32.totalorder %s100, 0
    %s103 = sadd.s32 %s102, 1
    %s104 = scalar_select %p101, %s102, %s103
    %p107 = pneg %p101
    %p108 = scmp.eq.s32.totalorder %s10, 1
    %p109 = por %p107, %p108
    %p110 = scmp.ne.s32.totalorder %s102, %s105
    %p111 = scmp.eq.s32.totalorder %s10, 0
    %p112 = por %p110, %p111
    %p113 = scmp.ne.s32.totalorder %s102, %s105
    %p114 = scmp.eq.s32.totalorder %s15, 1
    %p115 = por %p113, %p114
    %p116 = scmp.ne.s32.totalorder %s105, %s106
    %p117 = scmp.eq.s32.totalorder %s15, 0
    %p118 = por %p116, %p117
    %p119 = scmp.ne.s32.totalorder %s105, %s106
    %p120 = scmp.eq.s32.totalorder %s16, 1
    %p121 = por %p119, %p120
    %p123 = scmp.ne.s32.totalorder %s106, %s122
    %p124 = scmp.eq.s32.totalorder %s16, 0
    %p125 = por %p123, %p124
    %s126 = ssub.s32 %s17, %s29
    %s127 = ssub.s32 %s18, %s25
    %s128 = sor.u32 %s126, %s127
    %p129 = scmp.eq.s32.totalorder %s128, 0
    %s131 = sadd.s32 %s130, 1
    %s132 = scalar_select %p129, %s130, %s131
    %p135 = pneg %p129
    %p136 = scmp.eq.s32.totalorder %s10, 1
    %p137 = por %p135, %p136
    %p138 = scmp.ne.s32.totalorder %s130, %s133
    %p139 = scmp.eq.s32.totalorder %s10, 0
    %p140 = por %p138, %p139
    %p141 = scmp.ne.s32.totalorder %s130, %s133
    %p142 = scmp.eq.s32.totalorder %s15, 1
    %p143 = por %p141, %p142
    %p144 = scmp.ne.s32.totalorder %s133, %s134
    %p145 = scmp.eq.s32.totalorder %s15, 0
    %p146 = por %p144, %p145
    %p147 = scmp.ne.s32.totalorder %s133, %s134
    %p148 = scmp.eq.s32.totalorder %s16, 1
    %p149 = por %p147, %p148
    %p151 = scmp.ne.s32.totalorder %s134, %s150
    %p152 = scmp.eq.s32.totalorder %s16, 0
    %p153 = por %p151, %p152
    %p154 = scmp.le.s32.totalorder 1, %s10
    %p155 = scmp.lt.s32.totalorder %s10, 3
    %p156 = pnand %p154, %p155
    %p157 = pneg %p156
    // Predicated region
    $region9: #{transformer_encoder.9} parent=5 // pred_check
      _
    $region10: #{transformer_encoder.9} parent=5 // pred_check_branch
      %159 = sbr.rel (%p156) target = $region12
    $region11: #{transformer_encoder.9} parent=5 // pred_region
      %s160 = ssub.s32 %s10, 1
      // Predicated region
      $region13: #{transformer_encoder.9} parent=11 // pred_check
        %p161 = pneg %p71
      $region14: #{transformer_encoder.9} parent=11 // pred_check_branch
        %163 = sbr.rel (%p161) target = $region16
      $region15: #{transformer_encoder.9} parent=11 // pred_region
        _
      $region16: #{transformer_encoder.9} parent=11 // pred_fallthru
        _
      // Predicated region
      $region17: #{transformer_encoder.9} parent=11 // pred_check
        %p164 = pneg %p92
      $region18: #{transformer_encoder.9} parent=11 // pred_check_branch
        %166 = sbr.rel (%p164) target = $region20
      $region19: #{transformer_encoder.9} parent=11 // pred_region
        _
      $region20: #{transformer_encoder.9} parent=11 // pred_fallthru
        _
      // Predicated region
      $region21: #{transformer_encoder.9} parent=11 // pred_check
        %p167 = pneg %p118
      $region22: #{transformer_encoder.9} parent=11 // pred_check_branch
        %169 = sbr.rel (%p167) target = $region24
      $region23: #{transformer_encoder.9} parent=11 // pred_region
        %p170 = scmp.lt.s32.totalorder %s20, 0
        %s171 = scalar_select %p170, %s20, 0
        %s172 = smul.addr %s171, 8
        %s173 = scalar_lea.vmem %s3, %s172
      $region24: #{transformer_encoder.9} parent=11 // pred_fallthru
        _
    $region12: #{transformer_encoder.9} parent=5 // pred_fallthru
      _
    %p174 = scmp.lt.s32.totalorder %s10, 2
    // Predicated region
    $region25: #{transformer_encoder.9} parent=5 // pred_check
      %p175 = pneg %p174
    $region26: #{transformer_encoder.9} parent=5 // pred_check_branch
      %177 = sbr.rel (%p175) target = $region28
    $region27: #{transformer_encoder.9} parent=5 // pred_region
      // Predicated region
      $region29: #{transformer_encoder.9} parent=27 // pred_check
        %p178 = pneg %p44
      $region30: #{transformer_encoder.9} parent=27 // pred_check_branch
        %180 = sbr.rel (%p178) target = $region32
      $region31: #{transformer_encoder.9} parent=27 // pred_region
        %p181 = scmp.lt.s32.totalorder %s17, 1
        %s182 = scalar_select %p181, %s17, 1
        %p183 = scmp.lt.s32.totalorder %s18, 0
        %s184 = scalar_select %p183, %s18, 0
        %s185 = sadd.s32 %s184, %s182
        %s186 = smul.addr %s185, 8
        %s187 = scalar_lea.vmem %s0, %s186
      $region32: #{transformer_encoder.9} parent=27 // pred_fallthru
        _
    $region28: #{transformer_encoder.9} parent=5 // pred_fallthru
      _
    %p188 = scmp.le.s32.totalorder 1, %s10
    %p189 = scmp.lt.s32.totalorder %s10, 3
    %p190 = pnand %p188, %p189
    %p191 = pneg %p190
    // Predicated region
    $region33: #{transformer_encoder.9} parent=5 // pred_check
      _
    $region34: #{transformer_encoder.9} parent=5 // pred_check_branch
      %193 = sbr.rel (%p190) target = $region36
    $region35: #{transformer_encoder.9} parent=5 // pred_region
      %s194 = ssub.s32 %s10, 1
      %p195 = scmp.lt.s32.totalorder %s19, 1
      %s196 = scalar_select %p195, %s19, 1
      %p197 = scmp.lt.s32.totalorder %s20, 0
      %s198 = scalar_select %p197, %s20, 0
      %s199 = sadd.s32 %s198, %s196
      %s200 = smul.addr %s199, 8
      %s201 = scalar_lea.vmem %s0, %s200
      %p202 = pneg %p50
      %p203 = pneg %p47
      %p204 = pneg %p71
      %p205 = pneg %p68
      %p206 = pneg %p92
      %p207 = pneg %p89
      %p208 = scmp.lt.s32.totalorder %s20, 0
      %s209 = scalar_select %p208, %s20, 0
      %s210 = smul.addr %s209, 8
      %s211 = scalar_lea.vmem %s3, %s210
      %p212 = pneg %p118
      %p213 = pneg %p115
      %p214 = pneg %p146
      %p215 = pneg %p143
      %p216 = scmp.lt.s32.totalorder %s19, 1
      %s217 = scalar_select %p216, %s19, 1
      %p218 = scmp.lt.s32.totalorder %s20, 0
      %s219 = scalar_select %p218, %s20, 0
      %s220 = sadd.s32 %s219, %s217
      %s221 = smul.addr %s220, 4
      %s222 = scalar_lea.vmem %s4, %s221
      %p223 = scmp.lt.s32.totalorder %s19, 1
      %s224 = scalar_select %p223, %s19, 1
      %p225 = scmp.lt.s32.totalorder %s20, 0
      %s226 = scalar_select %p225, %s20, 0
      %s227 = sadd.s32 %s226, %s224
      %s228 = smul.addr %s227, 8
      %s229 = scalar_lea.vmem %s0, %s228
      %p230 = scmp.lt.s32.totalorder %s20, 0
      %s231 = scalar_select %p230, %s20, 0
      %s232 = smul.addr %s231, 8
      %s233 = scalar_lea.vmem %s3, %s232
      %p234 = scmp.lt.s32.totalorder %s19, 1
      %s235 = scalar_select %p234, %s19, 1
      %p236 = scmp.lt.s32.totalorder %s20, 0
      %s237 = scalar_select %p236, %s20, 0
      %s238 = sadd.s32 %s237, %s235
      %s239 = smul.addr %s238, 4
      %s240 = scalar_lea.vmem %s4, %s239
      %v242 = vld [vmem:[%s229] sm:$0xff]
      %v243 = vpack.c.bf16 %v242, %v242
      %v244 = vld [vmem:[%s1] sm:$0xf]
      %v245 = vld [vmem:[%s1 + $0x4] sm:$0xf]
      %v246 = vld [vmem:[%s2] sm:$0x1]
      %v248 = vlaneseq
      %v249 = vshrl.u32 %v248, 7
      %v250 = vsub.s32 0, %v249
      %v251 = vrot.slane %v246, %v250
      %v255 = vunpack.c.l.b16 %v244
      %v256 = vunpack.c.l.b16 %v245
      %v257 = vpack.c.b16 %v256, %v255
      %vm259 = vcmask 130048
      %v261 = vsel %vm259, %v243, 0
      %263 = vmatprep.subr.bf16.mxu0 0
      %264 = vmatpush1.bf16.msra.mxu0 %v257
      %265 = vmatprep.subr.bf16.mxu0 0
      %266 = vmatpush1.bf16.msra.mxu0 0
      %267 = vmatprep.subr.bf16.mxu0 0
      %268 = vmatpush1.bf16.msra.mxu0 0
      %269 = vmatprep.subr.bf16.mxu0 0
      %270 = vmatpush1.bf16.msra.mxu0 0
      %271 = vmatprep.subr.bf16.mxu0 0
      %272 = vmatpush1.bf16.msra.mxu0 0
      %273 = vmatprep.subr.bf16.mxu0 0
      %274 = vmatpush1.bf16.msra.mxu0 0
      %275 = vmatprep.subr.bf16.mxu0 0
      %276 = vmatpush1.bf16.msra.mxu0 0
      %277 = vmatprep.subr.bf16.mxu0 0
      %278 = vmatpush1.bf16.msra.mxu0 0
      %279 = vmatprep.subr.bf16.mxu0 0
      %280 = vmatpush1.bf16.msra.mxu0 0
      %281 = vmatprep.subr.bf16.mxu0 0
      %282 = vmatpush1.bf16.msra.mxu0 0
      %283 = vmatprep.subr.bf16.mxu0 0
      %284 = vmatpush1.bf16.msra.mxu0 0
      %285 = vmatprep.subr.bf16.mxu0 0
      %286 = vmatpush1.bf16.msra.mxu0 0
      %287 = vmatprep.subr.bf16.mxu0 0
      %288 = vmatpush1.bf16.msra.mxu0 0
      %289 = vmatprep.subr.bf16.mxu0 0
      %290 = vmatpush1.bf16.msra.mxu0 0
      %291 = vmatprep.subr.bf16.mxu0 0
      %292 = vmatpush1.bf16.msra.mxu0 0
      %293 = vmatprep.subr.bf16.mxu0 0
      %294 = vmatpush1.bf16.msra.mxu0 0
      %295 = vmatprep.mubr.bf16.mxu0 0
      %296 = vmatmul.mubr.bf16.gmra.mrb[0].mxu0 %v261
      %v297 = vpop.f32.mrb[0].mxu0
      %v298 = vadd.f32 %v251, %v297
      %v299 = vpop.f32.mrb[0].mxu0
      %v300 = vpop.f32.mrb[0].mxu0
      %v301 = vpop.f32.mrb[0].mxu0
      %302 = vdwg.mxu0
      %v303 = vld [vmem:[%s233] sm:$0xff]
      %v304 = vadd.f32 %v298, %v303
      %v305 = vpack.c.bf16 %v304, %v304
      %vm306 = vcmask 257024
      %307 = vst.msk [vmem:[%s240] sm:$0xf] %vm306, %v305
      %p308 = scmp.lt.s32.totalorder %s19, 1
      %s309 = scalar_select %p308, %s19, 1
      %p310 = scmp.lt.s32.totalorder %s20, 0
      %s311 = scalar_select %p310, %s20, 0
      %s312 = sadd.s32 %s311, %s309
      %s313 = smul.addr %s312, 4
      %s314 = scalar_lea.vmem %s4, %s313
      // Predicated region
      $region37: #{transformer_encoder.9} parent=35 // pred_check
        %p315 = pneg %p143
      $region38: #{transformer_encoder.9} parent=35 // pred_check_branch
        %317 = sbr.rel (%p315) target = $region40
      $region39: #{transformer_encoder.9} parent=35 // pred_region
        _
      $region40: #{transformer_encoder.9} parent=35 // pred_fallthru
        _
    $region36: #{transformer_encoder.9} parent=5 // pred_fallthru
      _
    %p318 = scmp.le.s32.totalorder 2, %s10
    // Predicated region
    $region41: #{transformer_encoder.9} parent=5 // pred_check
      %p319 = pneg %p318
    $region42: #{transformer_encoder.9} parent=5 // pred_check_branch
      %321 = sbr.rel (%p319) target = $region44
    $region43: #{transformer_encoder.9} parent=5 // pred_region
      %s322 = ssub.s32 %s10, 2
      // Predicated region
      $region45: #{transformer_encoder.9} parent=43 // pred_check
        %p323 = pneg %p149
      $region46: #{transformer_encoder.9} parent=43 // pred_check_branch
        %325 = sbr.rel (%p323) target = $region48
      $region47: #{transformer_encoder.9} parent=43 // pred_region
        %p326 = scmp.lt.s32.totalorder %s21, 1
        %s327 = scalar_select %p326, %s21, 1
        %p328 = scmp.lt.s32.totalorder %s22, 0
        %s329 = scalar_select %p328, %s22, 0
        %s330 = sadd.s32 %s329, %s327
        %s331 = smul.addr %s330, 4
        %s332 = scalar_lea.vmem %s4, %s331
      $region48: #{transformer_encoder.9} parent=43 // pred_fallthru
        _
    $region44: #{transformer_encoder.9} parent=5 // pred_fallthru
      _
  $region6: #{transformer_encoder.9} parent=0 // loop_footer
    %s14 = sadd.s32 1, %s10
  $region7: #{transformer_encoder.9} parent=0 // loop_footer_branch
    %9 = sbr.rel target = $region3
  $region8: #{transformer_encoder.9} parent=0 // loop_exit
    _

// kernel: transformer_encoder.10
$region0: #{transformer_encoder.10}
  #allocation0 [shape = 'u32[]', space=smem, size = 0x4, offset = 0x4, fixed_abs, tag = 'smem constant byte address 0x4 - core index']
  #allocation1 [shape = 'u32[144,128]{1,0:T(1,128)}', space=vmem, size = 0x12000, scoped, tag = 'internal scratch']
  %s0 = inlined_call_operand.vmem [shape: bf16[2,8,32], index: 0, kind: input, shape index: {}]
  %s1 = inlined_call_operand.vmem [shape: bf16[32,96], index: 1, kind: input, shape index: {}]
  %s2 = inlined_call_operand.vmem [shape: f32[1,96], index: 2, kind: input, shape index: {}]
  %s3 = inlined_call_operand.vmem [shape: bf16[2,8,96], index: 3, kind: output, shape index: {}]
  %s4 = sld [smem:[#allocation0]]
  $region45: #{transformer_encoder.10} parent=0
    _
  %s6 = ssub.s32 1, %s4
  %s7 = scalar_select 0, %s6, %s4
  loop: start=0, step=1, limit=4
  $region2: #{transformer_encoder.10} parent=0 // loop_pre_header
    _
  $region3: #{transformer_encoder.10} parent=0 // loop_header
    %s9 = sphi 0, %s13
    %p10 = scmp.ge.s32.totalorder %s9, 4
    %s16 = sphi 0, %s28
    %s17 = sphi 0, %s24
    %s18 = sphi 0, %s16
    %s19 = sphi 0, %s17
    %s20 = sphi 0, %s18
    %s21 = sphi 0, %s19
    %s33 = sphi 0, %s35
    %s36 = sphi 0, %s33
    %s37 = sphi 0, %s36
    %s53 = sphi 0, %s37
    %s57 = sphi 0, %s57
    %s59 = sphi 0, %s57
    %s60 = sphi 0, %s59
    %s74 = sphi 0, %s60
    %s78 = sphi 0, %s78
    %s80 = sphi 0, %s78
    %s81 = sphi 0, %s80
    %s95 = sphi 0, %s81
    %s103 = sphi 0, %s105
    %s106 = sphi 0, %s103
    %s107 = sphi 0, %s106
    %s123 = sphi 0, %s107
  $region4: #{transformer_encoder.10} parent=0 // loop_header_branch
    %12 = sbr.rel (%p10) target = $region8
  $region5: #{transformer_encoder.10} parent=0 // loop_body
    %s14 = ssub.s32 %s9, 1
    %s15 = ssub.s32 %s9, 2
    %s22 = sadd.s32 1, %s17
    %p23 = scmp.ge.s32.totalorder %s22, 1
    %s24 = scalar_select %p23, 0, %s22
    %s25 = sadd.s32 1, %s16
    %s26 = scalar_select %p23, %s25, %s16
    %p27 = scmp.ge.s32.totalorder %s26, 2
    %s28 = scalar_select %p27, 0, %s26
    %s29 = ssub.s32 %s16, %s28
    %s30 = ssub.s32 %s17, %s24
    %s31 = sor.u32 %s29, %s30
    %p32 = scmp.eq.s32.totalorder %s31, 0
    %s34 = sadd.s32 %s33, 1
    %s35 = scalar_select %p32, %s33, %s34
    %p38 = pneg %p32
    %p39 = scmp.eq.s32.totalorder %s9, 1
    %p40 = por %p38, %p39
    %p41 = scmp.ne.s32.totalorder %s33, %s36
    %p42 = scmp.eq.s32.totalorder %s9, 0
    %p43 = por %p41, %p42
    %p44 = scmp.ne.s32.totalorder %s33, %s36
    %p45 = scmp.eq.s32.totalorder %s14, 1
    %p46 = por %p44, %p45
    %p47 = scmp.ne.s32.totalorder %s36, %s37
    %p48 = scmp.eq.s32.totalorder %s14, 0
    %p49 = por %p47, %p48
    %p50 = scmp.ne.s32.totalorder %s36, %s37
    %p51 = scmp.eq.s32.totalorder %s15, 1
    %p52 = por %p50, %p51
    %p54 = scmp.ne.s32.totalorder %s37, %s53
    %p55 = scmp.eq.s32.totalorder %s15, 0
    %p56 = por %p54, %p55
    %s58 = sadd.s32 %s57, 1
    %p61 = scmp.eq.s32.totalorder %s9, 1
    %p62 = scmp.ne.s32.totalorder %s57, %s59
    %p63 = scmp.eq.s32.totalorder %s9, 0
    %p64 = por %p62, %p63
    %p65 = scmp.ne.s32.totalorder %s57, %s59
    %p66 = scmp.eq.s32.totalorder %s14, 1
    %p67 = por %p65, %p66
    %p68 = scmp.ne.s32.totalorder %s59, %s60
    %p69 = scmp.eq.s32.totalorder %s14, 0
    %p70 = por %p68, %p69
    %p71 = scmp.ne.s32.totalorder %s59, %s60
    %p72 = scmp.eq.s32.totalorder %s15, 1
    %p73 = por %p71, %p72
    %p75 = scmp.ne.s32.totalorder %s60, %s74
    %p76 = scmp.eq.s32.totalorder %s15, 0
    %p77 = por %p75, %p76
    %s79 = sadd.s32 %s78, 1
    %p82 = scmp.eq.s32.totalorder %s9, 1
    %p83 = scmp.ne.s32.totalorder %s78, %s80
    %p84 = scmp.eq.s32.totalorder %s9, 0
    %p85 = por %p83, %p84
    %p86 = scmp.ne.s32.totalorder %s78, %s80
    %p87 = scmp.eq.s32.totalorder %s14, 1
    %p88 = por %p86, %p87
    %p89 = scmp.ne.s32.totalorder %s80, %s81
    %p90 = scmp.eq.s32.totalorder %s14, 0
    %p91 = por %p89, %p90
    %p92 = scmp.ne.s32.totalorder %s80, %s81
    %p93 = scmp.eq.s32.totalorder %s15, 1
    %p94 = por %p92, %p93
    %p96 = scmp.ne.s32.totalorder %s81, %s95
    %p97 = scmp.eq.s32.totalorder %s15, 0
    %p98 = por %p96, %p97
    %s99 = ssub.s32 %s16, %s28
    %s100 = ssub.s32 %s17, %s24
    %s101 = sor.u32 %s99, %s100
    %p102 = scmp.eq.s32.totalorder %s101, 0
    %s104 = sadd.s32 %s103, 1
    %s105 = scalar_select %p102, %s103, %s104
    %p108 = pneg %p102
    %p109 = scmp.eq.s32.totalorder %s9, 1
    %p110 = por %p108, %p109
    %p111 = scmp.ne.s32.totalorder %s103, %s106
    %p112 = scmp.eq.s32.totalorder %s9, 0
    %p113 = por %p111, %p112
    %p114 = scmp.ne.s32.totalorder %s103, %s106
    %p115 = scmp.eq.s32.totalorder %s14, 1
    %p116 = por %p114, %p115
    %p117 = scmp.ne.s32.totalorder %s106, %s107
    %p118 = scmp.eq.s32.totalorder %s14, 0
    %p119 = por %p117, %p118
    %p120 = scmp.ne.s32.totalorder %s106, %s107
    %p121 = scmp.eq.s32.totalorder %s15, 1
    %p122 = por %p120, %p121
    %p124 = scmp.ne.s32.totalorder %s107, %s123
    %p125 = scmp.eq.s32.totalorder %s15, 0
    %p126 = por %p124, %p125
    %p127 = scmp.le.s32.totalorder 1, %s9
    %p128 = scmp.lt.s32.totalorder %s9, 3
    %p129 = pnand %p127, %p128
    %p130 = pneg %p129
    // Predicated region
    $region9: #{transformer_encoder.10} parent=5 // pred_check
      _
    $region10: #{transformer_encoder.10} parent=5 // pred_check_branch
      %132 = sbr.rel (%p129) target = $region12
    $region11: #{transformer_encoder.10} parent=5 // pred_region
      %s133 = ssub.s32 %s9, 1
      // Predicated region
      $region13: #{transformer_encoder.10} parent=11 // pred_check
        %p134 = pneg %p70
      $region14: #{transformer_encoder.10} parent=11 // pred_check_branch
        %136 = sbr.rel (%p134) target = $region16
      $region15: #{transformer_encoder.10} parent=11 // pred_region
        _
      $region16: #{transformer_encoder.10} parent=11 // pred_fallthru
        _
      // Predicated region
      $region17: #{transformer_encoder.10} parent=11 // pred_check
        %p137 = pneg %p91
      $region18: #{transformer_encoder.10} parent=11 // pred_check_branch
        %139 = sbr.rel (%p137) target = $region20
      $region19: #{transformer_encoder.10} parent=11 // pred_region
        _
      $region20: #{transformer_encoder.10} parent=11 // pred_fallthru
        _
    $region12: #{transformer_encoder.10} parent=5 // pred_fallthru
      _
    %p140 = scmp.lt.s32.totalorder %s9, 2
    // Predicated region
    $region21: #{transformer_encoder.10} parent=5 // pred_check
      %p141 = pneg %p140
    $region22: #{transformer_encoder.10} parent=5 // pred_check_branch
      %143 = sbr.rel (%p141) target = $region24
    $region23: #{transformer_encoder.10} parent=5 // pred_region
      // Predicated region
      $region25: #{transformer_encoder.10} parent=23 // pred_check
        %p144 = pneg %p43
      $region26: #{transformer_encoder.10} parent=23 // pred_check_branch
        %146 = sbr.rel (%p144) target = $region28
      $region27: #{transformer_encoder.10} parent=23 // pred_region
        %p147 = scmp.lt.s32.totalorder %s16, 1
        %s148 = scalar_select %p147, %s16, 1
        %p149 = scmp.lt.s32.totalorder %s17, 0
        %s150 = scalar_select %p149, %s17, 0
        %s151 = sadd.s32 %s150, %s148
        %s152 = smul.addr %s151, 4
        %s153 = scalar_lea.vmem %s0, %s152
      $region28: #{transformer_encoder.10} parent=23 // pred_fallthru
        _
    $region24: #{transformer_encoder.10} parent=5 // pred_fallthru
      _
    %p154 = scmp.le.s32.totalorder 1, %s9
    %p155 = scmp.lt.s32.totalorder %s9, 3
    %p156 = pnand %p154, %p155
    %p157 = pneg %p156
    // Predicated region
    $region29: #{transformer_encoder.10} parent=5 // pred_check
      _
    $region30: #{transformer_encoder.10} parent=5 // pred_check_branch
      %159 = sbr.rel (%p156) target = $region32
    $region31: #{transformer_encoder.10} parent=5 // pred_region
      %s160 = ssub.s32 %s9, 1
      %p161 = scmp.lt.s32.totalorder %s18, 1
      %s162 = scalar_select %p161, %s18, 1
      %p163 = scmp.lt.s32.totalorder %s19, 0
      %s164 = scalar_select %p163, %s19, 0
      %s165 = sadd.s32 %s164, %s162
      %s166 = smul.addr %s165, 4
      %s167 = scalar_lea.vmem %s0, %s166
      %p168 = pneg %p49
      %p169 = pneg %p46
      %p170 = pneg %p70
      %p171 = pneg %p67
      %p172 = pneg %p91
      %p173 = pneg %p88
      %p174 = pneg %p119
      %p175 = pneg %p116
      %p176 = scmp.lt.s32.totalorder %s18, 1
      %s177 = scalar_select %p176, %s18, 1
      %p178 = scmp.lt.s32.totalorder %s19, 0
      %s179 = scalar_select %p178, %s19, 0
      %s180 = sadd.s32 %s179, %s177
      %s181 = smul.addr %s180, 4
      %s182 = scalar_lea.vmem %s3, %s181
      %p183 = scmp.lt.s32.totalorder %s18, 1
      %s184 = scalar_select %p183, %s18, 1
      %p185 = scmp.lt.s32.totalorder %s19, 0
      %s186 = scalar_select %p185, %s19, 0
      %s187 = sadd.s32 %s186, %s184
      %s188 = smul.addr %s187, 4
      %s189 = scalar_lea.vmem %s0, %s188
      %p190 = scmp.lt.s32.totalorder %s18, 1
      %s191 = scalar_select %p190, %s18, 1
      %p192 = scmp.lt.s32.totalorder %s19, 0
      %s193 = scalar_select %p192, %s19, 0
      %s194 = sadd.s32 %s193, %s191
      %s195 = smul.addr %s194, 4
      %s196 = scalar_lea.vmem %s3, %s195
      %v198 = vld [vmem:[%s189] sm:$0xf]
      %v199 = vld [vmem:[%s1] sm:$0xf]
      %v200 = vld [vmem:[%s1 + $0x4] sm:$0xf]
      %v201 = vld [vmem:[%s1 + $0x8] sm:$0xf]
      %v202 = vld [vmem:[%s1 + $0xc] sm:$0xf]
      %v203 = vld [vmem:[%s2] sm:$0x1]
      %v205 = vlaneseq
      %v206 = vshrl.u32 %v205, 7
      %v207 = vsub.s32 0, %v206
      %v208 = vrot.slane %v203, %v207
      %v214 = vunpack.c.l.b16 %v199
      %v215 = vunpack.c.l.b16 %v200
      %v216 = vunpack.c.l.b16 %v201
      %v217 = vunpack.c.l.b16 %v202
      %v218 = vpack.c.b16 %v215, %v214
      %v219 = vpack.c.b16 %v217, %v216
      %vm222 = vcmask 261120
      %v224 = vsel %vm222, %v198, 0
      %226 = vmatprep.subr.bf16.mxu0 0
      %227 = vmatpush1.bf16.msra.mxu0 %v218
      %228 = vmatprep.subr.bf16.mxu0 0
      %229 = vmatpush1.bf16.msra.mxu0 %v219
      %230 = vmatprep.subr.bf16.mxu0 0
      %231 = vmatpush1.bf16.msra.mxu0 0
      %232 = vmatprep.subr.bf16.mxu0 0
      %233 = vmatpush1.bf16.msra.mxu0 0
      %234 = vmatprep.subr.bf16.mxu0 0
      %235 = vmatpush1.bf16.msra.mxu0 0
      %236 = vmatprep.subr.bf16.mxu0 0
      %237 = vmatpush1.bf16.msra.mxu0 0
      %238 = vmatprep.subr.bf16.mxu0 0
      %239 = vmatpush1.bf16.msra.mxu0 0
      %240 = vmatprep.subr.bf16.mxu0 0
      %241 = vmatpush1.bf16.msra.mxu0 0
      %242 = vmatprep.subr.bf16.mxu0 0
      %243 = vmatpush1.bf16.msra.mxu0 0
      %244 = vmatprep.subr.bf16.mxu0 0
      %245 = vmatpush1.bf16.msra.mxu0 0
      %246 = vmatprep.subr.bf16.mxu0 0
      %247 = vmatpush1.bf16.msra.mxu0 0
      %248 = vmatprep.subr.bf16.mxu0 0
      %249 = vmatpush1.bf16.msra.mxu0 0
      %250 = vmatprep.subr.bf16.mxu0 0
      %251 = vmatpush1.bf16.msra.mxu0 0
      %252 = vmatprep.subr.bf16.mxu0 0
      %253 = vmatpush1.bf16.msra.mxu0 0
      %254 = vmatprep.subr.bf16.mxu0 0
      %255 = vmatpush1.bf16.msra.mxu0 0
      %256 = vmatprep.subr.bf16.mxu0 0
      %257 = vmatpush1.bf16.msra.mxu0 0
      %258 = vmatprep.mubr.bf16.mxu0 0
      %259 = vmatmul.mubr.bf16.gmra.mrb[0].mxu0 %v224
      %v260 = vpop.f32.mrb[0].mxu0
      %v261 = vadd.f32 %v208, %v260
      %v262 = vpop.f32.mrb[0].mxu0
      %v263 = vpop.f32.mrb[0].mxu0
      %v264 = vpop.f32.mrb[0].mxu0
      %265 = vdwg.mxu0
      %v266 = vpack.c.bf16 %v261, %v261
      %vm267 = vcmask 781312
      %268 = vst.msk [vmem:[%s196] sm:$0xf] %vm267, %v266
      %p269 = scmp.lt.s32.totalorder %s18, 1
      %s270 = scalar_select %p269, %s18, 1
      %p271 = scmp.lt.s32.totalorder %s19, 0
      %s272 = scalar_select %p271, %s19, 0
      %s273 = sadd.s32 %s272, %s270
      %s274 = smul.addr %s273, 4
      %s275 = scalar_lea.vmem %s3, %s274
      // Predicated region
      $region33: #{transformer_encoder.10} parent=31 // pred_check
        %p276 = pneg %p116
      $region34: #{transformer_encoder.10} parent=31 // pred_check_branch
        %278 = sbr.rel (%p276) target = $region36
      $region35: #{transformer_encoder.10} parent=31 // pred_region
        _
      $region36: #{transformer_encoder.10} parent=31 // pred_fallthru
        _
    $region32: #{transformer_encoder.10} parent=5 // pred_fallthru
      _
    %p279 = scmp.le.s32.totalorder 2, %s9
    // Predicated region
    $region37: #{transformer_encoder.10} parent=5 // pred_check
      %p280 = pneg %p279
    $region38: #{transformer_encoder.10} parent=5 // pred_check_branch
      %282 = sbr.rel (%p280) target = $region40
    $region39: #{transformer_encoder.10} parent=5 // pred_region
      %s283 = ssub.s32 %s9, 2
      // Predicated region
      $region41: #{transformer_encoder.10} parent=39 // pred_check
        %p284 = pneg %p122
      $region42: #{transformer_encoder.10} parent=39 // pred_check_branch
        %286 = sbr.rel (%p284) target = $region44
      $region43: #{transformer_encoder.10} parent=39 // pred_region
        %p287 = scmp.lt.s32.totalorder %s20, 1
        %s288 = scalar_select %p287, %s20, 1
        %p289 = scmp.lt.s32.totalorder %s21, 0
        %s290 = scalar_select %p289, %s21, 0
        %s291 = sadd.s32 %s290, %s288
        %s292 = smul.addr %s291, 4
        %s293 = scalar_lea.vmem %s3, %s292
      $region44: #{transformer_encoder.10} parent=39 // pred_fallthru
        _
    $region40: #{transformer_encoder.10} parent=5 // pred_fallthru
      _
  $region6: #{transformer_encoder.10} parent=0 // loop_footer
    %s13 = sadd.s32 1, %s9
  $region7: #{transformer_encoder.10} parent=0 // loop_footer_branch
    %8 = sbr.rel target = $region3
  $region8: #{transformer_encoder.10} parent=0 // loop_exit
    _

// kernel: transformer_encoder.11
$region0: #{transformer_encoder.11}
  #allocation0 [shape = 'u32[]', space=smem, size = 0x4, offset = 0x4, fixed_abs, tag = 'smem constant byte address 0x4 - core index']
  #allocation1 [shape = 'u32[144,128]{1,0:T(1,128)}', space=vmem, size = 0x12000, scoped, tag = 'internal scratch']
  %s0 = inlined_call_operand.vmem [shape: bf16[2,8,96], index: 0, kind: input, shape index: {}, may-alias: {0,1}]
  %s1 = inlined_call_operand.vmem [shape: bf16[2,8,96], index: 1, kind: input, shape index: {}, may-alias: {0,1}]
  %s2 = inlined_call_operand.vmem [shape: bf16[2,8,32], index: 2, kind: output, shape index: {}]
  %s3 = sld [smem:[#allocation0]]
  $region41: #{transformer_encoder.11} parent=0
    _
  %s5 = ssub.s32 1, %s3
  %s6 = scalar_select 0, %s5, %s3
  loop: start=0, step=1, limit=4
  $region2: #{transformer_encoder.11} parent=0 // loop_pre_header
    _
  $region3: #{transformer_encoder.11} parent=0 // loop_header
    %s8 = sphi 0, %s12
    %p9 = scmp.ge.s32.totalorder %s8, 4
    %s15 = sphi 0, %s27
    %s16 = sphi 0, %s23
    %s17 = sphi 0, %s15
    %s18 = sphi 0, %s16
    %s19 = sphi 0, %s17
    %s20 = sphi 0, %s18
    %s32 = sphi 0, %s34
    %s35 = sphi 0, %s32
    %s36 = sphi 0, %s35
    %s52 = sphi 0, %s36
    %s58 = sphi 0, %s60
    %s61 = sphi 0, %s58
    %s62 = sphi 0, %s61
    %s78 = sphi 0, %s62
    %s86 = sphi 0, %s88
    %s89 = sphi 0, %s86
    %s90 = sphi 0, %s89
    %s106 = sphi 0, %s90
  $region4: #{transformer_encoder.11} parent=0 // loop_header_branch
    %11 = sbr.rel (%p9) target = $region8
  $region5: #{transformer_encoder.11} parent=0 // loop_body
    %s13 = ssub.s32 %s8, 1
    %s14 = ssub.s32 %s8, 2
    %s21 = sadd.s32 1, %s16
    %p22 = scmp.ge.s32.totalorder %s21, 1
    %s23 = scalar_select %p22, 0, %s21
    %s24 = sadd.s32 1, %s15
    %s25 = scalar_select %p22, %s24, %s15
    %p26 = scmp.ge.s32.totalorder %s25, 2
    %s27 = scalar_select %p26, 0, %s25
    %s28 = ssub.s32 %s15, %s27
    %s29 = ssub.s32 %s16, %s23
    %s30 = sor.u32 %s28, %s29
    %p31 = scmp.eq.s32.totalorder %s30, 0
    %s33 = sadd.s32 %s32, 1
    %s34 = scalar_select %p31, %s32, %s33
    %p37 = pneg %p31
    %p38 = scmp.eq.s32.totalorder %s8, 1
    %p39 = por %p37, %p38
    %p40 = scmp.ne.s32.totalorder %s32, %s35
    %p41 = scmp.eq.s32.totalorder %s8, 0
    %p42 = por %p40, %p41
    %p43 = scmp.ne.s32.totalorder %s32, %s35
    %p44 = scmp.eq.s32.totalorder %s13, 1
    %p45 = por %p43, %p44
    %p46 = scmp.ne.s32.totalorder %s35, %s36
    %p47 = scmp.eq.s32.totalorder %s13, 0
    %p48 = por %p46, %p47
    %p49 = scmp.ne.s32.totalorder %s35, %s36
    %p50 = scmp.eq.s32.totalorder %s14, 1
    %p51 = por %p49, %p50
    %p53 = scmp.ne.s32.totalorder %s36, %s52
    %p54 = scmp.eq.s32.totalorder %s14, 0
    %p55 = por %p53, %p54
    %s56 = ssub.s32 %s15, %s27
    %p57 = scmp.eq.s32.totalorder %s56, 0
    %s59 = sadd.s32 %s58, 1
    %s60 = scalar_select %p57, %s58, %s59
    %p63 = pneg %p57
    %p64 = scmp.eq.s32.totalorder %s8, 1
    %p65 = por %p63, %p64
    %p66 = scmp.ne.s32.totalorder %s58, %s61
    %p67 = scmp.eq.s32.totalorder %s8, 0
    %p68 = por %p66, %p67
    %p69 = scmp.ne.s32.totalorder %s58, %s61
    %p70 = scmp.eq.s32.totalorder %s13, 1
    %p71 = por %p69, %p70
    %p72 = scmp.ne.s32.totalorder %s61, %s62
    %p73 = scmp.eq.s32.totalorder %s13, 0
    %p74 = por %p72, %p73
    %p75 = scmp.ne.s32.totalorder %s61, %s62
    %p76 = scmp.eq.s32.totalorder %s14, 1
    %p77 = por %p75, %p76
    %p79 = scmp.ne.s32.totalorder %s62, %s78
    %p80 = scmp.eq.s32.totalorder %s14, 0
    %p81 = por %p79, %p80
    %s82 = ssub.s32 %s15, %s27
    %s83 = ssub.s32 %s16, %s23
    %s84 = sor.u32 %s82, %s83
    %p85 = scmp.eq.s32.totalorder %s84, 0
    %s87 = sadd.s32 %s86, 1
    %s88 = scalar_select %p85, %s86, %s87
    %p91 = pneg %p85
    %p92 = scmp.eq.s32.totalorder %s8, 1
    %p93 = por %p91, %p92
    %p94 = scmp.ne.s32.totalorder %s86, %s89
    %p95 = scmp.eq.s32.totalorder %s8, 0
    %p96 = por %p94, %p95
    %p97 = scmp.ne.s32.totalorder %s86, %s89
    %p98 = scmp.eq.s32.totalorder %s13, 1
    %p99 = por %p97, %p98
    %p100 = scmp.ne.s32.totalorder %s89, %s90
    %p101 = scmp.eq.s32.totalorder %s13, 0
    %p102 = por %p100, %p101
    %p103 = scmp.ne.s32.totalorder %s89, %s90
    %p104 = scmp.eq.s32.totalorder %s14, 1
    %p105 = por %p103, %p104
    %p107 = scmp.ne.s32.totalorder %s90, %s106
    %p108 = scmp.eq.s32.totalorder %s14, 0
    %p109 = por %p107, %p108
    %p110 = scmp.le.s32.totalorder 1, %s8
    %p111 = scmp.lt.s32.totalorder %s8, 3
    %p112 = pnand %p110, %p111
    %p113 = pneg %p112
    // Predicated region
    $region9: #{transformer_encoder.11} parent=5 // pred_check
      _
    $region10: #{transformer_encoder.11} parent=5 // pred_check_branch
      %115 = sbr.rel (%p112) target = $region12
    $region11: #{transformer_encoder.11} parent=5 // pred_region
      %s116 = ssub.s32 %s8, 1
    $region12: #{transformer_encoder.11} parent=5 // pred_fallthru
      _
    %p117 = scmp.lt.s32.totalorder %s8, 2
    // Predicated region
    $region13: #{transformer_encoder.11} parent=5 // pred_check
      %p118 = pneg %p117
    $region14: #{transformer_encoder.11} parent=5 // pred_check_branch
      %120 = sbr.rel (%p118) target = $region16
    $region15: #{transformer_encoder.11} parent=5 // pred_region
      // Predicated region
      $region17: #{transformer_encoder.11} parent=15 // pred_check
        %p121 = pneg %p42
      $region18: #{transformer_encoder.11} parent=15 // pred_check_branch
        %123 = sbr.rel (%p121) target = $region20
      $region19: #{transformer_encoder.11} parent=15 // pred_region
        %p124 = scmp.lt.s32.totalorder %s15, 1
        %s125 = scalar_select %p124, %s15, 1
        %p126 = scmp.lt.s32.totalorder %s16, 0
        %s127 = scalar_select %p126, %s16, 0
        %s128 = sadd.s32 %s127, %s125
        %s129 = smul.addr %s128, 4
        %s130 = scalar_lea.vmem %s0, %s129
      $region20: #{transformer_encoder.11} parent=15 // pred_fallthru
        _
      // Predicated region
      $region21: #{transformer_encoder.11} parent=15 // pred_check
        %p131 = pneg %p68
      $region22: #{transformer_encoder.11} parent=15 // pred_check_branch
        %133 = sbr.rel (%p131) target = $region24
      $region23: #{transformer_encoder.11} parent=15 // pred_region
        %p134 = scmp.lt.s32.totalorder %s15, 1
        %s135 = scalar_select %p134, %s15, 1
        %s136 = smul.addr %s135, 4
        %s137 = scalar_lea.vmem %s1, %s136
      $region24: #{transformer_encoder.11} parent=15 // pred_fallthru
        _
    $region16: #{transformer_encoder.11} parent=5 // pred_fallthru
      _
    %p138 = scmp.le.s32.totalorder 1, %s8
    %p139 = scmp.lt.s32.totalorder %s8, 3
    %p140 = pnand %p138, %p139
    %p141 = pneg %p140
    // Predicated region
    $region25: #{transformer_encoder.11} parent=5 // pred_check
      _
    $region26: #{transformer_encoder.11} parent=5 // pred_check_branch
      %143 = sbr.rel (%p140) target = $region28
    $region27: #{transformer_encoder.11} parent=5 // pred_region
      %s144 = ssub.s32 %s8, 1
      %p145 = scmp.lt.s32.totalorder %s17, 1
      %s146 = scalar_select %p145, %s17, 1
      %p147 = scmp.lt.s32.totalorder %s18, 0
      %s148 = scalar_select %p147, %s18, 0
      %s149 = sadd.s32 %s148, %s146
      %s150 = smul.addr %s149, 4
      %s151 = scalar_lea.vmem %s0, %s150
      %p152 = pneg %p48
      %p153 = pneg %p45
      %p154 = scmp.lt.s32.totalorder %s17, 1
      %s155 = scalar_select %p154, %s17, 1
      %s156 = smul.addr %s155, 4
      %s157 = scalar_lea.vmem %s1, %s156
      %p158 = pneg %p74
      %p159 = pneg %p71
      %p160 = pneg %p102
      %p161 = pneg %p99
      %p162 = scmp.lt.s32.totalorder %s17, 1
      %s163 = scalar_select %p162, %s17, 1
      %p164 = scmp.lt.s32.totalorder %s18, 0
      %s165 = scalar_select %p164, %s18, 0
      %s166 = sadd.s32 %s165, %s163
      %s167 = smul.addr %s166, 4
      %s168 = scalar_lea.vmem %s2, %s167
      %p169 = scmp.lt.s32.totalorder %s17, 1
      %s170 = scalar_select %p169, %s17, 1
      %p171 = scmp.lt.s32.totalorder %s18, 0
      %s172 = scalar_select %p171, %s18, 0
      %s173 = sadd.s32 %s172, %s170
      %s174 = smul.addr %s173, 4
      %s175 = scalar_lea.vmem %s0, %s174
      %p176 = scmp.lt.s32.totalorder %s17, 1
      %s177 = scalar_select %p176, %s17, 1
      %s178 = smul.addr %s177, 4
      %s179 = scalar_lea.vmem %s1, %s178
      %p180 = scmp.lt.s32.totalorder %s17, 1
      %s181 = scalar_select %p180, %s17, 1
      %p182 = scmp.lt.s32.totalorder %s18, 0
      %s183 = scalar_select %p182, %s18, 0
      %s184 = sadd.s32 %s183, %s181
      %s185 = smul.addr %s184, 4
      %s186 = scalar_lea.vmem %s2, %s185
      %v188 = vld [vmem:[%s175] sm:$0xf]
      %v189 = vunpack.c.l.bf16 %v188
      %v190 = vmul.f32 %v189, 0.35355338
      %v191 = vpack.c.bf16 %v190, %v190
      %v192 = vld [vmem:[%s179] sm:$0xf]
      %v194 = vunpack.c.l.b16 %v192
      %v195 = vpack.c.b16 %v194, %v194
      %196 = vrot.lane.b32.xlu0 %v195, 96
      %v197 = vpop.permute.xlu0 %196
      %vm198 = vcmask 64512
      %v200 = vsel %vm198, %v191, 0
      %v203 = vsel %vm198, %v197, 0
      %205 = vmatprep.subr.bf16.mxu0 0
      %206 = vmatpush1.bf16.xpose.msra.mxu0 %v203
      %207 = vmatprep.subr.bf16.mxu0 0
      %208 = vmatpush1.bf16.xpose.msra.mxu0 0
      %209 = vmatprep.subr.bf16.mxu0 0
      %210 = vmatpush1.bf16.xpose.msra.mxu0 0
      %211 = vmatprep.subr.bf16.mxu0 0
      %212 = vmatpush1.bf16.xpose.msra.mxu0 0
      %213 = vmatprep.subr.bf16.mxu0 0
      %214 = vmatpush1.bf16.xpose.msra.mxu0 0
      %215 = vmatprep.subr.bf16.mxu0 0
      %216 = vmatpush1.bf16.xpose.msra.mxu0 0
      %217 = vmatprep.subr.bf16.mxu0 0
      %218 = vmatpush1.bf16.xpose.msra.mxu0 0
      %219 = vmatprep.subr.bf16.mxu0 0
      %220 = vmatpush1.bf16.xpose.msra.mxu0 0
      %221 = vmatprep.subr.bf16.mxu0 0
      %222 = vmatpush1.bf16.xpose.msra.mxu0 0
      %223 = vmatprep.subr.bf16.mxu0 0
      %224 = vmatpush1.bf16.xpose.msra.mxu0 0
      %225 = vmatprep.subr.bf16.mxu0 0
      %226 = vmatpush1.bf16.xpose.msra.mxu0 0
      %227 = vmatprep.subr.bf16.mxu0 0
      %228 = vmatpush1.bf16.xpose.msra.mxu0 0
      %229 = vmatprep.subr.bf16.mxu0 0
      %230 = vmatpush1.bf16.xpose.msra.mxu0 0
      %231 = vmatprep.subr.bf16.mxu0 0
      %232 = vmatpush1.bf16.xpose.msra.mxu0 0
      %233 = vmatprep.subr.bf16.mxu0 0
      %234 = vmatpush1.bf16.xpose.msra.mxu0 0
      %235 = vmatprep.subr.bf16.mxu0 0
      %236 = vmatpush1.bf16.xpose.msra.mxu0 0
      %237 = vmatprep.mubr.bf16.mxu0 0
      %238 = vmatmul.mubr.bf16.gmra.mrb[0].mxu0 %v200
      %v239 = vpop.f32.mrb[0].mxu0
      %v240 = vadd.f32 0.0, %v239
      %v241 = vpop.f32.mrb[0].mxu0
      %v242 = vpop.f32.mrb[0].mxu0
      %v243 = vpop.f32.mrb[0].mxu0
      %244 = vdwg.mxu0
      %v245 = vsel %vm198, %v240, -inf
      %246 = vmax.xlane.f32.xlu0 %v245
      %v247 = vpop.xlane.xlu0 %246
      %v248 = vsub.f32 %v240, %v247
      %v249 = vmul.f32 %v248, 1.442695
      %v250 = vpow.pop %v249
      %v251 = vsel %vm198, %v250, 0.0
      %252 = vadd.xlane.f32.xlu0 %v251
      %v253 = vpop.xlane.xlu0 %252
      %v254 = vrcp.pop %v253
      %v255 = vmul.f32 %v250, %v254
      %v256 = vpack.c.bf16 %v255, %v255
      %257 = vrot.lane.b32.xlu0 %v195, 64
      %v258 = vpop.permute.xlu0 %257
      %v260 = vsel %vm198, %v256, 0
      %vm262 = vcmask 1043456
      %v264 = vsel %vm262, %v258, 0
      %266 = vmatprep.subr.bf16.mxu0 0
      %267 = vmatpush1.bf16.msra.mxu0 %v264
      %268 = vmatprep.subr.bf16.mxu0 0
      %269 = vmatpush1.bf16.msra.mxu0 0
      %270 = vmatprep.subr.bf16.mxu0 0
      %271 = vmatpush1.bf16.msra.mxu0 0
      %272 = vmatprep.subr.bf16.mxu0 0
      %273 = vmatpush1.bf16.msra.mxu0 0
      %274 = vmatprep.subr.bf16.mxu0 0
      %275 = vmatpush1.bf16.msra.mxu0 0
      %276 = vmatprep.subr.bf16.mxu0 0
      %277 = vmatpush1.bf16.msra.mxu0 0
      %278 = vmatprep.subr.bf16.mxu0 0
      %279 = vmatpush1.bf16.msra.mxu0 0
      %280 = vmatprep.subr.bf16.mxu0 0
      %281 = vmatpush1.bf16.msra.mxu0 0
      %282 = vmatprep.subr.bf16.mxu0 0
      %283 = vmatpush1.bf16.msra.mxu0 0
      %284 = vmatprep.subr.bf16.mxu0 0
      %285 = vmatpush1.bf16.msra.mxu0 0
      %286 = vmatprep.subr.bf16.mxu0 0
      %287 = vmatpush1.bf16.msra.mxu0 0
      %288 = vmatprep.subr.bf16.mxu0 0
      %289 = vmatpush1.bf16.msra.mxu0 0
      %290 = vmatprep.subr.bf16.mxu0 0
      %291 = vmatpush1.bf16.msra.mxu0 0
      %292 = vmatprep.subr.bf16.mxu0 0
      %293 = vmatpush1.bf16.msra.mxu0 0
      %294 = vmatprep.subr.bf16.mxu0 0
      %295 = vmatpush1.bf16.msra.mxu0 0
      %296 = vmatprep.subr.bf16.mxu0 0
      %297 = vmatpush1.bf16.msra.mxu0 0
      %298 = vmatprep.mubr.bf16.mxu0 0
      %299 = vmatmul.mubr.bf16.gmra.mrb[0].mxu0 %v260
      %v300 = vpop.f32.mrb[0].mxu0
      %v301 = vadd.f32 0.0, %v300
      %v302 = vpop.f32.mrb[0].mxu0
      %v303 = vpop.f32.mrb[0].mxu0
      %v304 = vpop.f32.mrb[0].mxu0
      %305 = vdwg.mxu0
      %307 = vrot.lane.b32.xlu0 %v191, 120
      %v308 = vpop.permute.xlu0 %307
      %309 = vrot.lane.b32.xlu0 %v195, 88
      %v310 = vpop.permute.xlu0 %309
      %v312 = vsel %vm198, %v308, 0
      %v315 = vsel %vm198, %v310, 0
      %317 = vmatprep.subr.bf16.mxu0 0
      %318 = vmatpush1.bf16.xpose.msra.mxu0 %v315
      %319 = vmatprep.subr.bf16.mxu0 0
      %320 = vmatpush1.bf16.xpose.msra.mxu0 0
      %321 = vmatprep.subr.bf16.mxu0 0
      %322 = vmatpush1.bf16.xpose.msra.mxu0 0
      %323 = vmatprep.subr.bf16.mxu0 0
      %324 = vmatpush1.bf16.xpose.msra.mxu0 0
      %325 = vmatprep.subr.bf16.mxu0 0
      %326 = vmatpush1.bf16.xpose.msra.mxu0 0
      %327 = vmatprep.subr.bf16.mxu0 0
      %328 = vmatpush1.bf16.xpose.msra.mxu0 0
      %329 = vmatprep.subr.bf16.mxu0 0
      %330 = vmatpush1.bf16.xpose.msra.mxu0 0
      %331 = vmatprep.subr.bf16.mxu0 0
      %332 = vmatpush1.bf16.xpose.msra.mxu0 0
      %333 = vmatprep.subr.bf16.mxu0 0
      %334 = vmatpush1.bf16.xpose.msra.mxu0 0
      %335 = vmatprep.subr.bf16.mxu0 0
      %336 = vmatpush1.bf16.xpose.msra.mxu0 0
      %337 = vmatprep.subr.bf16.mxu0 0
      %338 = vmatpush1.bf16.xpose.msra.mxu0 0
      %339 = vmatprep.subr.bf16.mxu0 0
      %340 = vmatpush1.bf16.xpose.msra.mxu0 0
      %341 = vmatprep.subr.bf16.mxu0 0
      %342 = vmatpush1.bf16.xpose.msra.mxu0 0
      %343 = vmatprep.subr.bf16.mxu0 0
      %344 = vmatpush1.bf16.xpose.msra.mxu0 0
      %345 = vmatprep.subr.bf16.mxu0 0
      %346 = vmatpush1.bf16.xpose.msra.mxu0 0
      %347 = vmatprep.subr.bf16.mxu0 0
      %348 = vmatpush1.bf16.xpose.msra.mxu0 0
      %349 = vmatprep.mubr.bf16.mxu0 0
      %350 = vmatmul.mubr.bf16.gmra.mrb[0].mxu0 %v312
      %v351 = vpop.f32.mrb[0].mxu0
      %v352 = vadd.f32 0.0, %v351
      %v353 = vpop.f32.mrb[0].mxu0
      %v354 = vpop.f32.mrb[0].mxu0
      %v355 = vpop.f32.mrb[0].mxu0
      %356 = vdwg.mxu0
      %v357 = vsel %vm198, %v352, -inf
      %358 = vmax.xlane.f32.xlu0 %v357
      %v359 = vpop.xlane.xlu0 %358
      %v360 = vsub.f32 %v352, %v359
      %v361 = vmul.f32 %v360, 1.442695
      %v362 = vpow.pop %v361
      %v363 = vsel %vm198, %v362, 0.0
      %364 = vadd.xlane.f32.xlu0 %v363
      %v365 = vpop.xlane.xlu0 %364
      %v366 = vrcp.pop %v365
      %v367 = vmul.f32 %v362, %v366
      %v368 = vpack.c.bf16 %v367, %v367
      %369 = vrot.lane.b32.xlu0 %v195, 56
      %v370 = vpop.permute.xlu0 %369
      %v372 = vsel %vm198, %v368, 0
      %v375 = vsel %vm262, %v370, 0
      %377 = vmatprep.subr.bf16.mxu0 0
      %378 = vmatpush1.bf16.msra.mxu0 %v375
      %379 = vmatprep.subr.bf16.mxu0 0
      %380 = vmatpush1.bf16.msra.mxu0 0
      %381 = vmatprep.subr.bf16.mxu0 0
      %382 = vmatpush1.bf16.msra.mxu0 0
      %383 = vmatprep.subr.bf16.mxu0 0
      %384 = vmatpush1.bf16.msra.mxu0 0
      %385 = vmatprep.subr.bf16.mxu0 0
      %386 = vmatpush1.bf16.msra.mxu0 0
      %387 = vmatprep.subr.bf16.mxu0 0
      %388 = vmatpush1.bf16.msra.mxu0 0
      %389 = vmatprep.subr.bf16.mxu0 0
      %390 = vmatpush1.bf16.msra.mxu0 0
      %391 = vmatprep.subr.bf16.mxu0 0
      %392 = vmatpush1.bf16.msra.mxu0 0
      %393 = vmatprep.subr.bf16.mxu0 0
      %394 = vmatpush1.bf16.msra.mxu0 0
      %395 = vmatprep.subr.bf16.mxu0 0
      %396 = vmatpush1.bf16.msra.mxu0 0
      %397 = vmatprep.subr.bf16.mxu0 0
      %398 = vmatpush1.bf16.msra.mxu0 0
      %399 = vmatprep.subr.bf16.mxu0 0
      %400 = vmatpush1.bf16.msra.mxu0 0
      %401 = vmatprep.subr.bf16.mxu0 0
      %402 = vmatpush1.bf16.msra.mxu0 0
      %403 = vmatprep.subr.bf16.mxu0 0
      %404 = vmatpush1.bf16.msra.mxu0 0
      %405 = vmatprep.subr.bf16.mxu0 0
      %406 = vmatpush1.bf16.msra.mxu0 0
      %407 = vmatprep.subr.bf16.mxu0 0
      %408 = vmatpush1.bf16.msra.mxu0 0
      %409 = vmatprep.mubr.bf16.mxu0 0
      %410 = vmatmul.mubr.bf16.gmra.mrb[0].mxu0 %v372
      %v411 = vpop.f32.mrb[0].mxu0
      %v412 = vadd.f32 0.0, %v411
      %v413 = vpop.f32.mrb[0].mxu0
      %v414 = vpop.f32.mrb[0].mxu0
      %v415 = vpop.f32.mrb[0].mxu0
      %416 = vdwg.mxu0
      %417 = vrot.lane.b32.xlu0 %v191, 112
      %v418 = vpop.permute.xlu0 %417
      %419 = vrot.lane.b32.xlu0 %v195, 80
      %v420 = vpop.permute.xlu0 %419
      %v422 = vsel %vm198, %v418, 0
      %v425 = vsel %vm198, %v420, 0
      %427 = vmatprep.subr.bf16.mxu0 0
      %428 = vmatpush1.bf16.xpose.msra.mxu0 %v425
      %429 = vmatprep.subr.bf16.mxu0 0
      %430 = vmatpush1.bf16.xpose.msra.mxu0 0
      %431 = vmatprep.subr.bf16.mxu0 0
      %432 = vmatpush1.bf16.xpose.msra.mxu0 0
      %433 = vmatprep.subr.bf16.mxu0 0
      %434 = vmatpush1.bf16.xpose.msra.mxu0 0
      %435 = vmatprep.subr.bf16.mxu0 0
      %436 = vmatpush1.bf16.xpose.msra.mxu0 0
      %437 = vmatprep.subr.bf16.mxu0 0
      %438 = vmatpush1.bf16.xpose.msra.mxu0 0
      %439 = vmatprep.subr.bf16.mxu0 0
      %440 = vmatpush1.bf16.xpose.msra.mxu0 0
      %441 = vmatprep.subr.bf16.mxu0 0
      %442 = vmatpush1.bf16.xpose.msra.mxu0 0
      %443 = vmatprep.subr.bf16.mxu0 0
      %444 = vmatpush1.bf16.xpose.msra.mxu0 0
      %445 = vmatprep.subr.bf16.mxu0 0
      %446 = vmatpush1.bf16.xpose.msra.mxu0 0
      %447 = vmatprep.subr.bf16.mxu0 0
      %448 = vmatpush1.bf16.xpose.msra.mxu0 0
      %449 = vmatprep.subr.bf16.mxu0 0
      %450 = vmatpush1.bf16.xpose.msra.mxu0 0
      %451 = vmatprep.subr.bf16.mxu0 0
      %452 = vmatpush1.bf16.xpose.msra.mxu0 0
      %453 = vmatprep.subr.bf16.mxu0 0
      %454 = vmatpush1.bf16.xpose.msra.mxu0 0
      %455 = vmatprep.subr.bf16.mxu0 0
      %456 = vmatpush1.bf16.xpose.msra.mxu0 0
      %457 = vmatprep.subr.bf16.mxu0 0
      %458 = vmatpush1.bf16.xpose.msra.mxu0 0
      %459 = vmatprep.mubr.bf16.mxu0 0
      %460 = vmatmul.mubr.bf16.gmra.mrb[0].mxu0 %v422
      %v461 = vpop.f32.mrb[0].mxu0
      %v462 = vadd.f32 0.0, %v461
      %v463 = vpop.f32.mrb[0].mxu0
      %v464 = vpop.f32.mrb[0].mxu0
      %v465 = vpop.f32.mrb[0].mxu0
      %466 = vdwg.mxu0
      %v467 = vsel %vm198, %v462, -inf
      %468 = vmax.xlane.f32.xlu0 %v467
      %v469 = vpop.xlane.xlu0 %468
      %v470 = vsub.f32 %v462, %v469
      %v471 = vmul.f32 %v470, 1.442695
      %v472 = vpow.pop %v471
      %v473 = vsel %vm198, %v472, 0.0
      %474 = vadd.xlane.f32.xlu0 %v473
      %v475 = vpop.xlane.xlu0 %474
      %v476 = vrcp.pop %v475
      %v477 = vmul.f32 %v472, %v476
      %v478 = vpack.c.bf16 %v477, %v477
      %479 = vrot.lane.b32.xlu0 %v195, 48
      %v480 = vpop.permute.xlu0 %479
      %v482 = vsel %vm198, %v478, 0
      %v485 = vsel %vm262, %v480, 0
      %487 = vmatprep.subr.bf16.mxu0 0
      %488 = vmatpush1.bf16.msra.mxu0 %v485
      %489 = vmatprep.subr.bf16.mxu0 0
      %490 = vmatpush1.bf16.msra.mxu0 0
      %491 = vmatprep.subr.bf16.mxu0 0
      %492 = vmatpush1.bf16.msra.mxu0 0
      %493 = vmatprep.subr.bf16.mxu0 0
      %494 = vmatpush1.bf16.msra.mxu0 0
      %495 = vmatprep.subr.bf16.mxu0 0
      %496 = vmatpush1.bf16.msra.mxu0 0
      %497 = vmatprep.subr.bf16.mxu0 0
      %498 = vmatpush1.bf16.msra.mxu0 0
      %499 = vmatprep.subr.bf16.mxu0 0
      %500 = vmatpush1.bf16.msra.mxu0 0
      %501 = vmatprep.subr.bf16.mxu0 0
      %502 = vmatpush1.bf16.msra.mxu0 0
      %503 = vmatprep.subr.bf16.mxu0 0
      %504 = vmatpush1.bf16.msra.mxu0 0
      %505 = vmatprep.subr.bf16.mxu0 0
      %506 = vmatpush1.bf16.msra.mxu0 0
      %507 = vmatprep.subr.bf16.mxu0 0
      %508 = vmatpush1.bf16.msra.mxu0 0
      %509 = vmatprep.subr.bf16.mxu0 0
      %510 = vmatpush1.bf16.msra.mxu0 0
      %511 = vmatprep.subr.bf16.mxu0 0
      %512 = vmatpush1.bf16.msra.mxu0 0
      %513 = vmatprep.subr.bf16.mxu0 0
      %514 = vmatpush1.bf16.msra.mxu0 0
      %515 = vmatprep.subr.bf16.mxu0 0
      %516 = vmatpush1.bf16.msra.mxu0 0
      %517 = vmatprep.subr.bf16.mxu0 0
      %518 = vmatpush1.bf16.msra.mxu0 0
      %519 = vmatprep.mubr.bf16.mxu0 0
      %520 = vmatmul.mubr.bf16.gmra.mrb[0].mxu0 %v482
      %v521 = vpop.f32.mrb[0].mxu0
      %v522 = vadd.f32 0.0, %v521
      %v523 = vpop.f32.mrb[0].mxu0
      %v524 = vpop.f32.mrb[0].mxu0
      %v525 = vpop.f32.mrb[0].mxu0
      %526 = vdwg.mxu0
      %527 = vrot.lane.b32.xlu0 %v191, 104
      %v528 = vpop.permute.xlu0 %527
      %529 = vrot.lane.b32.xlu0 %v195, 72
      %v530 = vpop.permute.xlu0 %529
      %v532 = vsel %vm198, %v528, 0
      %v535 = vsel %vm198, %v530, 0
      %537 = vmatprep.subr.bf16.mxu0 0
      %538 = vmatpush1.bf16.xpose.msra.mxu0 %v535
      %539 = vmatprep.subr.bf16.mxu0 0
      %540 = vmatpush1.bf16.xpose.msra.mxu0 0
      %541 = vmatprep.subr.bf16.mxu0 0
      %542 = vmatpush1.bf16.xpose.msra.mxu0 0
      %543 = vmatprep.subr.bf16.mxu0 0
      %544 = vmatpush1.bf16.xpose.msra.mxu0 0
      %545 = vmatprep.subr.bf16.mxu0 0
      %546 = vmatpush1.bf16.xpose.msra.mxu0 0
      %547 = vmatprep.subr.bf16.mxu0 0
      %548 = vmatpush1.bf16.xpose.msra.mxu0 0
      %549 = vmatprep.subr.bf16.mxu0 0
      %550 = vmatpush1.bf16.xpose.msra.mxu0 0
      %551 = vmatprep.subr.bf16.mxu0 0
      %552 = vmatpush1.bf16.xpose.msra.mxu0 0
      %553 = vmatprep.subr.bf16.mxu0 0
      %554 = vmatpush1.bf16.xpose.msra.mxu0 0
      %555 = vmatprep.subr.bf16.mxu0 0
      %556 = vmatpush1.bf16.xpose.msra.mxu0 0
      %557 = vmatprep.subr.bf16.mxu0 0
      %558 = vmatpush1.bf16.xpose.msra.mxu0 0
      %559 = vmatprep.subr.bf16.mxu0 0
      %560 = vmatpush1.bf16.xpose.msra.mxu0 0
      %561 = vmatprep.subr.bf16.mxu0 0
      %562 = vmatpush1.bf16.xpose.msra.mxu0 0
      %563 = vmatprep.subr.bf16.mxu0 0
      %564 = vmatpush1.bf16.xpose.msra.mxu0 0
      %565 = vmatprep.subr.bf16.mxu0 0
      %566 = vmatpush1.bf16.xpose.msra.mxu0 0
      %567 = vmatprep.subr.bf16.mxu0 0
      %568 = vmatpush1.bf16.xpose.msra.mxu0 0
      %569 = vmatprep.mubr.bf16.mxu0 0
      %570 = vmatmul.mubr.bf16.gmra.mrb[0].mxu0 %v532
      %v571 = vpop.f32.mrb[0].mxu0
      %v572 = vadd.f32 0.0, %v571
      %v573 = vpop.f32.mrb[0].mxu0
      %v574 = vpop.f32.mrb[0].mxu0
      %v575 = vpop.f32.mrb[0].mxu0
      %576 = vdwg.mxu0
      %v577 = vsel %vm198, %v572, -inf
      %578 = vmax.xlane.f32.xlu0 %v577
      %v579 = vpop.xlane.xlu0 %578
      %v580 = vsub.f32 %v572, %v579
      %v581 = vmul.f32 %v580, 1.442695
      %v582 = vpow.pop %v581
      %v583 = vsel %vm198, %v582, 0.0
      %584 = vadd.xlane.f32.xlu0 %v583
      %v585 = vpop.xlane.xlu0 %584
      %v586 = vrcp.pop %v585
      %v587 = vmul.f32 %v582, %v586
      %v588 = vpack.c.bf16 %v587, %v587
      %589 = vrot.lane.b32.xlu0 %v195, 40
      %v590 = vpop.permute.xlu0 %589
      %v592 = vsel %vm198, %v588, 0
      %v595 = vsel %vm262, %v590, 0
      %597 = vmatprep.subr.bf16.mxu0 0
      %598 = vmatpush1.bf16.msra.mxu0 %v595
      %599 = vmatprep.subr.bf16.mxu0 0
      %600 = vmatpush1.bf16.msra.mxu0 0
      %601 = vmatprep.subr.bf16.mxu0 0
      %602 = vmatpush1.bf16.msra.mxu0 0
      %603 = vmatprep.subr.bf16.mxu0 0
      %604 = vmatpush1.bf16.msra.mxu0 0
      %605 = vmatprep.subr.bf16.mxu0 0
      %606 = vmatpush1.bf16.msra.mxu0 0
      %607 = vmatprep.subr.bf16.mxu0 0
      %608 = vmatpush1.bf16.msra.mxu0 0
      %609 = vmatprep.subr.bf16.mxu0 0
      %610 = vmatpush1.bf16.msra.mxu0 0
      %611 = vmatprep.subr.bf16.mxu0 0
      %612 = vmatpush1.bf16.msra.mxu0 0
      %613 = vmatprep.subr.bf16.mxu0 0
      %614 = vmatpush1.bf16.msra.mxu0 0
      %615 = vmatprep.subr.bf16.mxu0 0
      %616 = vmatpush1.bf16.msra.mxu0 0
      %617 = vmatprep.subr.bf16.mxu0 0
      %618 = vmatpush1.bf16.msra.mxu0 0
      %619 = vmatprep.subr.bf16.mxu0 0
      %620 = vmatpush1.bf16.msra.mxu0 0
      %621 = vmatprep.subr.bf16.mxu0 0
      %622 = vmatpush1.bf16.msra.mxu0 0
      %623 = vmatprep.subr.bf16.mxu0 0
      %624 = vmatpush1.bf16.msra.mxu0 0
      %625 = vmatprep.subr.bf16.mxu0 0
      %626 = vmatpush1.bf16.msra.mxu0 0
      %627 = vmatprep.subr.bf16.mxu0 0
      %628 = vmatpush1.bf16.msra.mxu0 0
      %629 = vmatprep.mubr.bf16.mxu0 0
      %630 = vmatmul.mubr.bf16.gmra.mrb[0].mxu0 %v592
      %v631 = vpop.f32.mrb[0].mxu0
      %v632 = vadd.f32 0.0, %v631
      %v633 = vpop.f32.mrb[0].mxu0
      %v634 = vpop.f32.mrb[0].mxu0
      %v635 = vpop.f32.mrb[0].mxu0
      %636 = vdwg.mxu0
      %638 = vrot.lane.b32.xlu0 %v412, 8
      %v639 = vpop.permute.xlu0 %638
      %642 = vrot.lane.b32.xlu0 %v522, 16
      %v643 = vpop.permute.xlu0 %642
      %646 = vrot.lane.b32.xlu0 %v632, 24
      %v647 = vpop.permute.xlu0 %646
      %v649 = vsel %vm198, %v301, %v639
      %vm650 = vcmask 130048
      %v651 = vsel %vm650, %v649, %v643
      %vm652 = vcmask 195584
      %v653 = vsel %vm652, %v651, %v647
      %v654 = vpack.c.bf16 %v653, %v653
      %vm655 = vcmask 257024
      %656 = vst.msk [vmem:[%s186] sm:$0xf] %vm655, %v654
      %p657 = scmp.lt.s32.totalorder %s17, 1
      %s658 = scalar_select %p657, %s17, 1
      %p659 = scmp.lt.s32.totalorder %s18, 0
      %s660 = scalar_select %p659, %s18, 0
      %s661 = sadd.s32 %s660, %s658
      %s662 = smul.addr %s661, 4
      %s663 = scalar_lea.vmem %s2, %s662
      // Predicated region
      $region29: #{transformer_encoder.11} parent=27 // pred_check
        %p664 = pneg %p99
      $region30: #{transformer_encoder.11} parent=27 // pred_check_branch
        %666 = sbr.rel (%p664) target = $region32
      $region31: #{transformer_encoder.11} parent=27 // pred_region
        _
      $region32: #{transformer_encoder.11} parent=27 // pred_fallthru
        _
    $region28: #{transformer_encoder.11} parent=5 // pred_fallthru
      _
    %p667 = scmp.le.s32.totalorder 2, %s8
    // Predicated region
    $region33: #{transformer_encoder.11} parent=5 // pred_check
      %p668 = pneg %p667
    $region34: #{transformer_encoder.11} parent=5 // pred_check_branch
      %670 = sbr.rel (%p668) target = $region36
    $region35: #{transformer_encoder.11} parent=5 // pred_region
      %s671 = ssub.s32 %s8, 2
      // Predicated region
      $region37: #{transformer_encoder.11} parent=35 // pred_check
        %p672 = pneg %p105
      $region38: #{transformer_encoder.11} parent=35 // pred_check_branch
        %674 = sbr.rel (%p672) target = $region40
      $region39: #{transformer_encoder.11} parent=35 // pred_region
        %p675 = scmp.lt.s32.totalorder %s19, 1
        %s676 = scalar_select %p675, %s19, 1
        %p677 = scmp.lt.s32.totalorder %s20, 0
        %s678 = scalar_select %p677, %s20, 0
        %s679 = sadd.s32 %s678, %s676
        %s680 = smul.addr %s679, 4
        %s681 = scalar_lea.vmem %s2, %s680
      $region40: #{transformer_encoder.11} parent=35 // pred_fallthru
        _
    $region36: #{transformer_encoder.11} parent=5 // pred_fallthru
      _
  $region6: #{transformer_encoder.11} parent=0 // loop_footer
    %s12 = sadd.s32 1, %s8
  $region7: #{transformer_encoder.11} parent=0 // loop_footer_branch
    %7 = sbr.rel target = $region3
  $region8: #{transformer_encoder.11} parent=0 // loop_exit
    _

// kernel: transformer_encoder.12
$region0: #{transformer_encoder.12}
  #allocation0 [shape = 'u32[]', space=smem, size = 0x4, offset = 0x4, fixed_abs, tag = 'smem constant byte address 0x4 - core index']
  #allocation1 [shape = 'u32[144,128]{1,0:T(1,128)}', space=vmem, size = 0x12000, scoped, tag = 'internal scratch']
  %s0 = inlined_call_operand.vmem [shape: bf16[2,8,32], index: 0, kind: input, shape index: {}]
  %s1 = inlined_call_operand.vmem [shape: bf16[32,32], index: 1, kind: input, shape index: {}]
  %s2 = inlined_call_operand.vmem [shape: f32[1,32], index: 2, kind: input, shape index: {}]
  %s3 = inlined_call_operand.vmem [shape: bf16[2,8,32], index: 3, kind: input, shape index: {}]
  %s4 = inlined_call_operand.vmem [shape: f32[1,32], index: 4, kind: input, shape index: {}]
  %s5 = inlined_call_operand.vmem [shape: f32[1,32], index: 5, kind: input, shape index: {}]
  %s6 = inlined_call_operand.vmem [shape: bf16[2,8,32], index: 6, kind: output, shape index: {}]
  %s7 = sld [smem:[#allocation0]]
  $region57: #{transformer_encoder.12} parent=0
    _
  %s9 = ssub.s32 1, %s7
  %s10 = scalar_select 0, %s9, %s7
  loop: start=0, step=1, limit=4
  $region2: #{transformer_encoder.12} parent=0 // loop_pre_header
    _
  $region3: #{transformer_encoder.12} parent=0 // loop_header
    %s12 = sphi 0, %s16
    %p13 = scmp.ge.s32.totalorder %s12, 4
    %s19 = sphi 0, %s31
    %s20 = sphi 0, %s27
    %s21 = sphi 0, %s19
    %s22 = sphi 0, %s20
    %s23 = sphi 0, %s21
    %s24 = sphi 0, %s22
    %s36 = sphi 0, %s38
    %s39 = sphi 0, %s36
    %s40 = sphi 0, %s39
    %s56 = sphi 0, %s40
    %s60 = sphi 0, %s60
    %s62 = sphi 0, %s60
    %s63 = sphi 0, %s62
    %s77 = sphi 0, %s63
    %s81 = sphi 0, %s81
    %s83 = sphi 0, %s81
    %s84 = sphi 0, %s83
    %s98 = sphi 0, %s84
    %s106 = sphi 0, %s108
    %s109 = sphi 0, %s106
    %s110 = sphi 0, %s109
    %s126 = sphi 0, %s110
    %s130 = sphi 0, %s130
    %s132 = sphi 0, %s130
    %s133 = sphi 0, %s132
    %s147 = sphi 0, %s133
    %s151 = sphi 0, %s151
    %s153 = sphi 0, %s151
    %s154 = sphi 0, %s153
    %s168 = sphi 0, %s154
    %s176 = sphi 0, %s178
    %s179 = sphi 0, %s176
    %s180 = sphi 0, %s179
    %s196 = sphi 0, %s180
  $region4: #{transformer_encoder.12} parent=0 // loop_header_branch
    %15 = sbr.rel (%p13) target = $region8
  $region5: #{transformer_encoder.12} parent=0 // loop_body
    %s17 = ssub.s32 %s12, 1
    %s18 = ssub.s32 %s12, 2
    %s25 = sadd.s32 1, %s20
    %p26 = scmp.ge.s32.totalorder %s25, 1
    %s27 = scalar_select %p26, 0, %s25
    %s28 = sadd.s32 1, %s19
    %s29 = scalar_select %p26, %s28, %s19
    %p30 = scmp.ge.s32.totalorder %s29, 2
    %s31 = scalar_select %p30, 0, %s29
    %s32 = ssub.s32 %s19, %s31
    %s33 = ssub.s32 %s20, %s27
    %s34 = sor.u32 %s32, %s33
    %p35 = scmp.eq.s32.totalorder %s34, 0
    %s37 = sadd.s32 %s36, 1
    %s38 = scalar_select %p35, %s36, %s37
    %p41 = pneg %p35
    %p42 = scmp.eq.s32.totalorder %s12, 1
    %p43 = por %p41, %p42
    %p44 = scmp.ne.s32.totalorder %s36, %s39
    %p45 = scmp.eq.s32.totalorder %s12, 0
    %p46 = por %p44, %p45
    %p47 = scmp.ne.s32.totalorder %s36, %s39
    %p48 = scmp.eq.s32.totalorder %s17, 1
    %p49 = por %p47, %p48
    %p50 = scmp.ne.s32.totalorder %s39, %s40
    %p51 = scmp.eq.s32.totalorder %s17, 0
    %p52 = por %p50, %p51
    %p53 = scmp.ne.s32.totalorder %s39, %s40
    %p54 = scmp.eq.s32.totalorder %s18, 1
    %p55 = por %p53, %p54
    %p57 = scmp.ne.s32.totalorder %s40, %s56
    %p58 = scmp.eq.s32.totalorder %s18, 0
    %p59 = por %p57, %p58
    %s61 = sadd.s32 %s60, 1
    %p64 = scmp.eq.s32.totalorder %s12, 1
    %p65 = scmp.ne.s32.totalorder %s60, %s62
    %p66 = scmp.eq.s32.totalorder %s12, 0
    %p67 = por %p65, %p66
    %p68 = scmp.ne.s32.totalorder %s60, %s62
    %p69 = scmp.eq.s32.totalorder %s17, 1
    %p70 = por %p68, %p69
    %p71 = scmp.ne.s32.totalorder %s62, %s63
    %p72 = scmp.eq.s32.totalorder %s17, 0
    %p73 = por %p71, %p72
    %p74 = scmp.ne.s32.totalorder %s62, %s63
    %p75 = scmp.eq.s32.totalorder %s18, 1
    %p76 = por %p74, %p75
    %p78 = scmp.ne.s32.totalorder %s63, %s77
    %p79 = scmp.eq.s32.totalorder %s18, 0
    %p80 = por %p78, %p79
    %s82 = sadd.s32 %s81, 1
    %p85 = scmp.eq.s32.totalorder %s12, 1
    %p86 = scmp.ne.s32.totalorder %s81, %s83
    %p87 = scmp.eq.s32.totalorder %s12, 0
    %p88 = por %p86, %p87
    %p89 = scmp.ne.s32.totalorder %s81, %s83
    %p90 = scmp.eq.s32.totalorder %s17, 1
    %p91 = por %p89, %p90
    %p92 = scmp.ne.s32.totalorder %s83, %s84
    %p93 = scmp.eq.s32.totalorder %s17, 0
    %p94 = por %p92, %p93
    %p95 = scmp.ne.s32.totalorder %s83, %s84
    %p96 = scmp.eq.s32.totalorder %s18, 1
    %p97 = por %p95, %p96
    %p99 = scmp.ne.s32.totalorder %s84, %s98
    %p100 = scmp.eq.s32.totalorder %s18, 0
    %p101 = por %p99, %p100
    %s102 = ssub.s32 %s19, %s31
    %s103 = ssub.s32 %s20, %s27
    %s104 = sor.u32 %s102, %s103
    %p105 = scmp.eq.s32.totalorder %s104, 0
    %s107 = sadd.s32 %s106, 1
    %s108 = scalar_select %p105, %s106, %s107
    %p111 = pneg %p105
    %p112 = scmp.eq.s32.totalorder %s12, 1
    %p113 = por %p111, %p112
    %p114 = scmp.ne.s32.totalorder %s106, %s109
    %p115 = scmp.eq.s32.totalorder %s12, 0
    %p116 = por %p114, %p115
    %p117 = scmp.ne.s32.totalorder %s106, %s109
    %p118 = scmp.eq.s32.totalorder %s17, 1
    %p119 = por %p117, %p118
    %p120 = scmp.ne.s32.totalorder %s109, %s110
    %p121 = scmp.eq.s32.totalorder %s17, 0
    %p122 = por %p120, %p121
    %p123 = scmp.ne.s32.totalorder %s109, %s110
    %p124 = scmp.eq.s32.totalorder %s18, 1
    %p125 = por %p123, %p124
    %p127 = scmp.ne.s32.totalorder %s110, %s126
    %p128 = scmp.eq.s32.totalorder %s18, 0
    %p129 = por %p127, %p128
    %s131 = sadd.s32 %s130, 1
    %p134 = scmp.eq.s32.totalorder %s12, 1
    %p135 = scmp.ne.s32.totalorder %s130, %s132
    %p136 = scmp.eq.s32.totalorder %s12, 0
    %p137 = por %p135, %p136
    %p138 = scmp.ne.s32.totalorder %s130, %s132
    %p139 = scmp.eq.s32.totalorder %s17, 1
    %p140 = por %p138, %p139
    %p141 = scmp.ne.s32.totalorder %s132, %s133
    %p142 = scmp.eq.s32.totalorder %s17, 0
    %p143 = por %p141, %p142
    %p144 = scmp.ne.s32.totalorder %s132, %s133
    %p145 = scmp.eq.s32.totalorder %s18, 1
    %p146 = por %p144, %p145
    %p148 = scmp.ne.s32.totalorder %s133, %s147
    %p149 = scmp.eq.s32.totalorder %s18, 0
    %p150 = por %p148, %p149
    %s152 = sadd.s32 %s151, 1
    %p155 = scmp.eq.s32.totalorder %s12, 1
    %p156 = scmp.ne.s32.totalorder %s151, %s153
    %p157 = scmp.eq.s32.totalorder %s12, 0
    %p158 = por %p156, %p157
    %p159 = scmp.ne.s32.totalorder %s151, %s153
    %p160 = scmp.eq.s32.totalorder %s17, 1
    %p161 = por %p159, %p160
    %p162 = scmp.ne.s32.totalorder %s153, %s154
    %p163 = scmp.eq.s32.totalorder %s17, 0
    %p164 = por %p162, %p163
    %p165 = scmp.ne.s32.totalorder %s153, %s154
    %p166 = scmp.eq.s32.totalorder %s18, 1
    %p167 = por %p165, %p166
    %p169 = scmp.ne.s32.totalorder %s154, %s168
    %p170 = scmp.eq.s32.totalorder %s18, 0
    %p171 = por %p169, %p170
    %s172 = ssub.s32 %s19, %s31
    %s173 = ssub.s32 %s20, %s27
    %s174 = sor.u32 %s172, %s173
    %p175 = scmp.eq.s32.totalorder %s174, 0
    %s177 = sadd.s32 %s176, 1
    %s178 = scalar_select %p175, %s176, %s177
    %p181 = pneg %p175
    %p182 = scmp.eq.s32.totalorder %s12, 1
    %p183 = por %p181, %p182
    %p184 = scmp.ne.s32.totalorder %s176, %s179
    %p185 = scmp.eq.s32.totalorder %s12, 0
    %p186 = por %p184, %p185
    %p187 = scmp.ne.s32.totalorder %s176, %s179
    %p188 = scmp.eq.s32.totalorder %s17, 1
    %p189 = por %p187, %p188
    %p190 = scmp.ne.s32.totalorder %s179, %s180
    %p191 = scmp.eq.s32.totalorder %s17, 0
    %p192 = por %p190, %p191
    %p193 = scmp.ne.s32.totalorder %s179, %s180
    %p194 = scmp.eq.s32.totalorder %s18, 1
    %p195 = por %p193, %p194
    %p197 = scmp.ne.s32.totalorder %s180, %s196
    %p198 = scmp.eq.s32.totalorder %s18, 0
    %p199 = por %p197, %p198
    %p200 = scmp.le.s32.totalorder 1, %s12
    %p201 = scmp.lt.s32.totalorder %s12, 3
    %p202 = pnand %p200, %p201
    %p203 = pneg %p202
    // Predicated region
    $region9: #{transformer_encoder.12} parent=5 // pred_check
      _
    $region10: #{transformer_encoder.12} parent=5 // pred_check_branch
      %205 = sbr.rel (%p202) target = $region12
    $region11: #{transformer_encoder.12} parent=5 // pred_region
      %s206 = ssub.s32 %s12, 1
      // Predicated region
      $region13: #{transformer_encoder.12} parent=11 // pred_check
        %p207 = pneg %p73
      $region14: #{transformer_encoder.12} parent=11 // pred_check_branch
        %209 = sbr.rel (%p207) target = $region16
      $region15: #{transformer_encoder.12} parent=11 // pred_region
        _
      $region16: #{transformer_encoder.12} parent=11 // pred_fallthru
        _
      // Predicated region
      $region17: #{transformer_encoder.12} parent=11 // pred_check
        %p210 = pneg %p94
      $region18: #{transformer_encoder.12} parent=11 // pred_check_branch
        %212 = sbr.rel (%p210) target = $region20
      $region19: #{transformer_encoder.12} parent=11 // pred_region
        _
      $region20: #{transformer_encoder.12} parent=11 // pred_fallthru
        _
      // Predicated region
      $region21: #{transformer_encoder.12} parent=11 // pred_check
        %p213 = pneg %p143
      $region22: #{transformer_encoder.12} parent=11 // pred_check_branch
        %215 = sbr.rel (%p213) target = $region24
      $region23: #{transformer_encoder.12} parent=11 // pred_region
        _
      $region24: #{transformer_encoder.12} parent=11 // pred_fallthru
        _
      // Predicated region
      $region25: #{transformer_encoder.12} parent=11 // pred_check
        %p216 = pneg %p164
      $region26: #{transformer_encoder.12} parent=11 // pred_check_branch
        %218 = sbr.rel (%p216) target = $region28
      $region27: #{transformer_encoder.12} parent=11 // pred_region
        _
      $region28: #{transformer_encoder.12} parent=11 // pred_fallthru
        _
    $region12: #{transformer_encoder.12} parent=5 // pred_fallthru
      _
    %p219 = scmp.lt.s32.totalorder %s12, 2
    // Predicated region
    $region29: #{transformer_encoder.12} parent=5 // pred_check
      %p220 = pneg %p219
    $region30: #{transformer_encoder.12} parent=5 // pred_check_branch
      %222 = sbr.rel (%p220) target = $region32
    $region31: #{transformer_encoder.12} parent=5 // pred_region
      // Predicated region
      $region33: #{transformer_encoder.12} parent=31 // pred_check
        %p223 = pneg %p46
      $region34: #{transformer_encoder.12} parent=31 // pred_check_branch
        %225 = sbr.rel (%p223) target = $region36
      $region35: #{transformer_encoder.12} parent=31 // pred_region
        %p226 = scmp.lt.s32.totalorder %s19, 1
        %s227 = scalar_select %p226, %s19, 1
        %p228 = scmp.lt.s32.totalorder %s20, 0
        %s229 = scalar_select %p228, %s20, 0
        %s230 = sadd.s32 %s229, %s227
        %s231 = smul.addr %s230, 4
        %s232 = scalar_lea.vmem %s0, %s231
      $region36: #{transformer_encoder.12} parent=31 // pred_fallthru
        _
      // Predicated region
      $region37: #{transformer_encoder.12} parent=31 // pred_check
        %p233 = pneg %p116
      $region38: #{transformer_encoder.12} parent=31 // pred_check_branch
        %235 = sbr.rel (%p233) target = $region40
      $region39: #{transformer_encoder.12} parent=31 // pred_region
        %p236 = scmp.lt.s32.totalorder %s19, 1
        %s237 = scalar_select %p236, %s19, 1
        %p238 = scmp.lt.s32.totalorder %s20, 0
        %s239 = scalar_select %p238, %s20, 0
        %s240 = sadd.s32 %s239, %s237
        %s241 = smul.addr %s240, 4
        %s242 = scalar_lea.vmem %s3, %s241
      $region40: #{transformer_encoder.12} parent=31 // pred_fallthru
        _
    $region32: #{transformer_encoder.12} parent=5 // pred_fallthru
      _
    %p243 = scmp.le.s32.totalorder 1, %s12
    %p244 = scmp.lt.s32.totalorder %s12, 3
    %p245 = pnand %p243, %p244
    %p246 = pneg %p245
    // Predicated region
    $region41: #{transformer_encoder.12} parent=5 // pred_check
      _
    $region42: #{transformer_encoder.12} parent=5 // pred_check_branch
      %248 = sbr.rel (%p245) target = $region44
    $region43: #{transformer_encoder.12} parent=5 // pred_region
      %s249 = ssub.s32 %s12, 1
      %p250 = scmp.lt.s32.totalorder %s21, 1
      %s251 = scalar_select %p250, %s21, 1
      %p252 = scmp.lt.s32.totalorder %s22, 0
      %s253 = scalar_select %p252, %s22, 0
      %s254 = sadd.s32 %s253, %s251
      %s255 = smul.addr %s254, 4
      %s256 = scalar_lea.vmem %s0, %s255
      %p257 = pneg %p52
      %p258 = pneg %p49
      %p259 = pneg %p73
      %p260 = pneg %p70
      %p261 = pneg %p94
      %p262 = pneg %p91
      %p263 = scmp.lt.s32.totalorder %s21, 1
      %s264 = scalar_select %p263, %s21, 1
      %p265 = scmp.lt.s32.totalorder %s22, 0
      %s266 = scalar_select %p265, %s22, 0
      %s267 = sadd.s32 %s266, %s264
      %s268 = smul.addr %s267, 4
      %s269 = scalar_lea.vmem %s3, %s268
      %p270 = pneg %p122
      %p271 = pneg %p119
      %p272 = pneg %p143
      %p273 = pneg %p140
      %p274 = pneg %p164
      %p275 = pneg %p161
      %p276 = pneg %p192
      %p277 = pneg %p189
      %p278 = scmp.lt.s32.totalorder %s21, 1
      %s279 = scalar_select %p278, %s21, 1
      %p280 = scmp.lt.s32.totalorder %s22, 0
      %s281 = scalar_select %p280, %s22, 0
      %s282 = sadd.s32 %s281, %s279
      %s283 = smul.addr %s282, 4
      %s284 = scalar_lea.vmem %s6, %s283
      %p285 = scmp.lt.s32.totalorder %s21, 1
      %s286 = scalar_select %p285, %s21, 1
      %p287 = scmp.lt.s32.totalorder %s22, 0
      %s288 = scalar_select %p287, %s22, 0
      %s289 = sadd.s32 %s288, %s286
      %s290 = smul.addr %s289, 4
      %s291 = scalar_lea.vmem %s0, %s290
      %p292 = scmp.lt.s32.totalorder %s21, 1
      %s293 = scalar_select %p292, %s21, 1
      %p294 = scmp.lt.s32.totalorder %s22, 0
      %s295 = scalar_select %p294, %s22, 0
      %s296 = sadd.s32 %s295, %s293
      %s297 = smul.addr %s296, 4
      %s298 = scalar_lea.vmem %s3, %s297
      %p299 = scmp.lt.s32.totalorder %s21, 1
      %s300 = scalar_select %p299, %s21, 1
      %p301 = scmp.lt.s32.totalorder %s22, 0
      %s302 = scalar_select %p301, %s22, 0
      %s303 = sadd.s32 %s302, %s300
      %s304 = smul.addr %s303, 4
      %s305 = scalar_lea.vmem %s6, %s304
      %v307 = vld [vmem:[%s291] sm:$0xf]
      %v308 = vld [vmem:[%s1] sm:$0xf]
      %v309 = vld [vmem:[%s1 + $0x4] sm:$0xf]
      %v310 = vld [vmem:[%s1 + $0x8] sm:$0xf]
      %v311 = vld [vmem:[%s1 + $0xc] sm:$0xf]
      %v312 = vld [vmem:[%s2] sm:$0x1]
      %v314 = vlaneseq
      %v315 = vshrl.u32 %v314, 7
      %v316 = vsub.s32 0, %v315
      %v317 = vrot.slane %v312, %v316
      %v323 = vunpack.c.l.b16 %v308
      %v324 = vunpack.c.l.b16 %v309
      %v325 = vunpack.c.l.b16 %v310
      %v326 = vunpack.c.l.b16 %v311
      %v327 = vpack.c.b16 %v324, %v323
      %v328 = vpack.c.b16 %v326, %v325
      %vm331 = vcmask 261120
      %v333 = vsel %vm331, %v307, 0
      %335 = vmatprep.subr.bf16.mxu0 0
      %336 = vmatpush1.bf16.msra.mxu0 %v327
      %337 = vmatprep.subr.bf16.mxu0 0
      %338 = vmatpush1.bf16.msra.mxu0 %v328
      %339 = vmatprep.subr.bf16.mxu0 0
      %340 = vmatpush1.bf16.msra.mxu0 0
      %341 = vmatprep.subr.bf16.mxu0 0
      %342 = vmatpush1.bf16.msra.mxu0 0
      %343 = vmatprep.subr.bf16.mxu0 0
      %344 = vmatpush1.bf16.msra.mxu0 0
      %345 = vmatprep.subr.bf16.mxu0 0
      %346 = vmatpush1.bf16.msra.mxu0 0
      %347 = vmatprep.subr.bf16.mxu0 0
      %348 = vmatpush1.bf16.msra.mxu0 0
      %349 = vmatprep.subr.bf16.mxu0 0
      %350 = vmatpush1.bf16.msra.mxu0 0
      %351 = vmatprep.subr.bf16.mxu0 0
      %352 = vmatpush1.bf16.msra.mxu0 0
      %353 = vmatprep.subr.bf16.mxu0 0
      %354 = vmatpush1.bf16.msra.mxu0 0
      %355 = vmatprep.subr.bf16.mxu0 0
      %356 = vmatpush1.bf16.msra.mxu0 0
      %357 = vmatprep.subr.bf16.mxu0 0
      %358 = vmatpush1.bf16.msra.mxu0 0
      %359 = vmatprep.subr.bf16.mxu0 0
      %360 = vmatpush1.bf16.msra.mxu0 0
      %361 = vmatprep.subr.bf16.mxu0 0
      %362 = vmatpush1.bf16.msra.mxu0 0
      %363 = vmatprep.subr.bf16.mxu0 0
      %364 = vmatpush1.bf16.msra.mxu0 0
      %365 = vmatprep.subr.bf16.mxu0 0
      %366 = vmatpush1.bf16.msra.mxu0 0
      %367 = vmatprep.mubr.bf16.mxu0 0
      %368 = vmatmul.mubr.bf16.gmra.mrb[0].mxu0 %v333
      %v369 = vpop.f32.mrb[0].mxu0
      %v370 = vadd.f32 %v317, %v369
      %v371 = vpop.f32.mrb[0].mxu0
      %v372 = vpop.f32.mrb[0].mxu0
      %v373 = vpop.f32.mrb[0].mxu0
      %374 = vdwg.mxu0
      %v375 = vld [vmem:[%s298] sm:$0xf]
      %v376 = vunpack.c.l.bf16 %v375
      %v377 = vadd.f32 %v376, %v370
      %v378 = vsel %vm331, %v377, 0.0
      %379 = vadd.xlane.f32.xlu0 %v378
      %v380 = vpop.xlane.xlu0 %379
      %v381 = vrcp.pop 32.0
      %v382 = vmul.f32 %v380, %v381
      %v383 = vsub.f32 %v377, %v382
      %v384 = vmul.f32 %v383, %v383
      %v385 = vsel %vm331, %v384, 0.0
      %386 = vadd.xlane.f32.xlu0 %v385
      %v387 = vpop.xlane.xlu0 %386
      %v388 = vmul.f32 %v387, %v381
      %v389 = vadd.f32 %v388, 1e-05
      %v390 = vrsqrt.pop %v389
      %v391 = vmul.f32 %v383, %v390
      %v392 = vld [vmem:[%s4] sm:$0x1]
      %v394 = vlaneseq
      %v395 = vshrl.u32 %v394, 7
      %v396 = vsub.s32 0, %v395
      %v397 = vrot.slane %v392, %v396
      %v399 = vmul.f32 %v391, %v397
      %v400 = vld [vmem:[%s5] sm:$0x1]
      %v402 = vlaneseq
      %v403 = vshrl.u32 %v402, 7
      %v404 = vsub.s32 0, %v403
      %v405 = vrot.slane %v400, %v404
      %v407 = vadd.f32 %v399, %v405
      %v408 = vpack.c.bf16 %v407, %v407
      %vm409 = vcmask 257024
      %410 = vst.msk [vmem:[%s305] sm:$0xf] %vm409, %v408
      %p411 = scmp.lt.s32.totalorder %s21, 1
      %s412 = scalar_select %p411, %s21, 1
      %p413 = scmp.lt.s32.totalorder %s22, 0
      %s414 = scalar_select %p413, %s22, 0
      %s415 = sadd.s32 %s414, %s412
      %s416 = smul.addr %s415, 4
      %s417 = scalar_lea.vmem %s6, %s416
      // Predicated region
      $region45: #{transformer_encoder.12} parent=43 // pred_check
        %p418 = pneg %p189
      $region46: #{transformer_encoder.12} parent=43 // pred_check_branch
        %420 = sbr.rel (%p418) target = $region48
      $region47: #{transformer_encoder.12} parent=43 // pred_region
        _
      $region48: #{transformer_encoder.12} parent=43 // pred_fallthru
        _
    $region44: #{transformer_encoder.12} parent=5 // pred_fallthru
      _
    %p421 = scmp.le.s32.totalorder 2, %s12
    // Predicated region
    $region49: #{transformer_encoder.12} parent=5 // pred_check
      %p422 = pneg %p421
    $region50: #{transformer_encoder.12} parent=5 // pred_check_branch
      %424 = sbr.rel (%p422) target = $region52
    $region51: #{transformer_encoder.12} parent=5 // pred_region
      %s425 = ssub.s32 %s12, 2
      // Predicated region
      $region53: #{transformer_encoder.12} parent=51 // pred_check
        %p426 = pneg %p195
      $region54: #{transformer_encoder.12} parent=51 // pred_check_branch
        %428 = sbr.rel (%p426) target = $region56
      $region55: #{transformer_encoder.12} parent=51 // pred_region
        %p429 = scmp.lt.s32.totalorder %s23, 1
        %s430 = scalar_select %p429, %s23, 1
        %p431 = scmp.lt.s32.totalorder %s24, 0
        %s432 = scalar_select %p431, %s24, 0
        %s433 = sadd.s32 %s432, %s430
        %s434 = smul.addr %s433, 4
        %s435 = scalar_lea.vmem %s6, %s434
      $region56: #{transformer_encoder.12} parent=51 // pred_fallthru
        _
    $region52: #{transformer_encoder.12} parent=5 // pred_fallthru
      _
  $region6: #{transformer_encoder.12} parent=0 // loop_footer
    %s16 = sadd.s32 1, %s12
  $region7: #{transformer_encoder.12} parent=0 // loop_footer_branch
    %11 = sbr.rel target = $region3
  $region8: #{transformer_encoder.12} parent=0 // loop_exit
    _

// kernel: transformer_encoder.13
$region0: #{transformer_encoder.13}
  #allocation0 [shape = 'u32[]', space=smem, size = 0x4, offset = 0x4, fixed_abs, tag = 'smem constant byte address 0x4 - core index']
  #allocation1 [shape = 'u32[144,128]{1,0:T(1,128)}', space=vmem, size = 0x12000, scoped, tag = 'internal scratch']
  %s0 = inlined_call_operand.vmem [shape: bf16[2,8,32], index: 0, kind: input, shape index: {}]
  %s1 = inlined_call_operand.vmem [shape: bf16[32,64], index: 1, kind: input, shape index: {}]
  %s2 = inlined_call_operand.vmem [shape: f32[1,64], index: 2, kind: input, shape index: {}]
  %s3 = inlined_call_operand.vmem [shape: bf16[64,32], index: 3, kind: input, shape index: {}]
  %s4 = inlined_call_operand.vmem [shape: f32[1,32], index: 4, kind: input, shape index: {}]
  %s5 = inlined_call_operand.vmem [shape: f32[1,32], index: 5, kind: input, shape index: {}]
  %s6 = inlined_call_operand.vmem [shape: f32[1,32], index: 6, kind: input, shape index: {}]
  %s7 = inlined_call_operand.vmem [shape: bf16[2,8,32], index: 7, kind: output, shape index: {}]
  %s8 = sld [smem:[#allocation0]]
  $region61: #{transformer_encoder.13} parent=0
    _
  %s10 = ssub.s32 1, %s8
  %s11 = scalar_select 0, %s10, %s8
  loop: start=0, step=1, limit=4
  $region2: #{transformer_encoder.13} parent=0 // loop_pre_header
    _
  $region3: #{transformer_encoder.13} parent=0 // loop_header
    %s13 = sphi 0, %s17
    %p14 = scmp.ge.s32.totalorder %s13, 4
    %s20 = sphi 0, %s32
    %s21 = sphi 0, %s28
    %s22 = sphi 0, %s20
    %s23 = sphi 0, %s21
    %s24 = sphi 0, %s22
    %s25 = sphi 0, %s23
    %s37 = sphi 0, %s39
    %s40 = sphi 0, %s37
    %s41 = sphi 0, %s40
    %s57 = sphi 0, %s41
    %s61 = sphi 0, %s61
    %s63 = sphi 0, %s61
    %s64 = sphi 0, %s63
    %s78 = sphi 0, %s64
    %s82 = sphi 0, %s82
    %s84 = sphi 0, %s82
    %s85 = sphi 0, %s84
    %s99 = sphi 0, %s85
    %s103 = sphi 0, %s103
    %s105 = sphi 0, %s103
    %s106 = sphi 0, %s105
    %s120 = sphi 0, %s106
    %s124 = sphi 0, %s124
    %s126 = sphi 0, %s124
    %s127 = sphi 0, %s126
    %s141 = sphi 0, %s127
    %s145 = sphi 0, %s145
    %s147 = sphi 0, %s145
    %s148 = sphi 0, %s147
    %s162 = sphi 0, %s148
    %s166 = sphi 0, %s166
    %s168 = sphi 0, %s166
    %s169 = sphi 0, %s168
    %s183 = sphi 0, %s169
    %s191 = sphi 0, %s193
    %s194 = sphi 0, %s191
    %s195 = sphi 0, %s194
    %s211 = sphi 0, %s195
  $region4: #{transformer_encoder.13} parent=0 // loop_header_branch
    %16 = sbr.rel (%p14) target = $region8
  $region5: #{transformer_encoder.13} parent=0 // loop_body
    %s18 = ssub.s32 %s13, 1
    %s19 = ssub.s32 %s13, 2
    %s26 = sadd.s32 1, %s21
    %p27 = scmp.ge.s32.totalorder %s26, 1
    %s28 = scalar_select %p27, 0, %s26
    %s29 = sadd.s32 1, %s20
    %s30 = scalar_select %p27, %s29, %s20
    %p31 = scmp.ge.s32.totalorder %s30, 2
    %s32 = scalar_select %p31, 0, %s30
    %s33 = ssub.s32 %s20, %s32
    %s34 = ssub.s32 %s21, %s28
    %s35 = sor.u32 %s33, %s34
    %p36 = scmp.eq.s32.totalorder %s35, 0
    %s38 = sadd.s32 %s37, 1
    %s39 = scalar_select %p36, %s37, %s38
    %p42 = pneg %p36
    %p43 = scmp.eq.s32.totalorder %s13, 1
    %p44 = por %p42, %p43
    %p45 = scmp.ne.s32.totalorder %s37, %s40
    %p46 = scmp.eq.s32.totalorder %s13, 0
    %p47 = por %p45, %p46
    %p48 = scmp.ne.s32.totalorder %s37, %s40
    %p49 = scmp.eq.s32.totalorder %s18, 1
    %p50 = por %p48, %p49
    %p51 = scmp.ne.s32.totalorder %s40, %s41
    %p52 = scmp.eq.s32.totalorder %s18, 0
    %p53 = por %p51, %p52
    %p54 = scmp.ne.s32.totalorder %s40, %s41
    %p55 = scmp.eq.s32.totalorder %s19, 1
    %p56 = por %p54, %p55
    %p58 = scmp.ne.s32.totalorder %s41, %s57
    %p59 = scmp.eq.s32.totalorder %s19, 0
    %p60 = por %p58, %p59
    %s62 = sadd.s32 %s61, 1
    %p65 = scmp.eq.s32.totalorder %s13, 1
    %p66 = scmp.ne.s32.totalorder %s61, %s63
    %p67 = scmp.eq.s32.totalorder %s13, 0
    %p68 = por %p66, %p67
    %p69 = scmp.ne.s32.totalorder %s61, %s63
    %p70 = scmp.eq.s32.totalorder %s18, 1
    %p71 = por %p69, %p70
    %p72 = scmp.ne.s32.totalorder %s63, %s64
    %p73 = scmp.eq.s32.totalorder %s18, 0
    %p74 = por %p72, %p73
    %p75 = scmp.ne.s32.totalorder %s63, %s64
    %p76 = scmp.eq.s32.totalorder %s19, 1
    %p77 = por %p75, %p76
    %p79 = scmp.ne.s32.totalorder %s64, %s78
    %p80 = scmp.eq.s32.totalorder %s19, 0
    %p81 = por %p79, %p80
    %s83 = sadd.s32 %s82, 1
    %p86 = scmp.eq.s32.totalorder %s13, 1
    %p87 = scmp.ne.s32.totalorder %s82, %s84
    %p88 = scmp.eq.s32.totalorder %s13, 0
    %p89 = por %p87, %p88
    %p90 = scmp.ne.s32.totalorder %s82, %s84
    %p91 = scmp.eq.s32.totalorder %s18, 1
    %p92 = por %p90, %p91
    %p93 = scmp.ne.s32.totalorder %s84, %s85
    %p94 = scmp.eq.s32.totalorder %s18, 0
    %p95 = por %p93, %p94
    %p96 = scmp.ne.s32.totalorder %s84, %s85
    %p97 = scmp.eq.s32.totalorder %s19, 1
    %p98 = por %p96, %p97
    %p100 = scmp.ne.s32.totalorder %s85, %s99
    %p101 = scmp.eq.s32.totalorder %s19, 0
    %p102 = por %p100, %p101
    %s104 = sadd.s32 %s103, 1
    %p107 = scmp.eq.s32.totalorder %s13, 1
    %p108 = scmp.ne.s32.totalorder %s103, %s105
    %p109 = scmp.eq.s32.totalorder %s13, 0
    %p110 = por %p108, %p109
    %p111 = scmp.ne.s32.totalorder %s103, %s105
    %p112 = scmp.eq.s32.totalorder %s18, 1
    %p113 = por %p111, %p112
    %p114 = scmp.ne.s32.totalorder %s105, %s106
    %p115 = scmp.eq.s32.totalorder %s18, 0
    %p116 = por %p114, %p115
    %p117 = scmp.ne.s32.totalorder %s105, %s106
    %p118 = scmp.eq.s32.totalorder %s19, 1
    %p119 = por %p117, %p118
    %p121 = scmp.ne.s32.totalorder %s106, %s120
    %p122 = scmp.eq.s32.totalorder %s19, 0
    %p123 = por %p121, %p122
    %s125 = sadd.s32 %s124, 1
    %p128 = scmp.eq.s32.totalorder %s13, 1
    %p129 = scmp.ne.s32.totalorder %s124, %s126
    %p130 = scmp.eq.s32.totalorder %s13, 0
    %p131 = por %p129, %p130
    %p132 = scmp.ne.s32.totalorder %s124, %s126
    %p133 = scmp.eq.s32.totalorder %s18, 1
    %p134 = por %p132, %p133
    %p135 = scmp.ne.s32.totalorder %s126, %s127
    %p136 = scmp.eq.s32.totalorder %s18, 0
    %p137 = por %p135, %p136
    %p138 = scmp.ne.s32.totalorder %s126, %s127
    %p139 = scmp.eq.s32.totalorder %s19, 1
    %p140 = por %p138, %p139
    %p142 = scmp.ne.s32.totalorder %s127, %s141
    %p143 = scmp.eq.s32.totalorder %s19, 0
    %p144 = por %p142, %p143
    %s146 = sadd.s32 %s145, 1
    %p149 = scmp.eq.s32.totalorder %s13, 1
    %p150 = scmp.ne.s32.totalorder %s145, %s147
    %p151 = scmp.eq.s32.totalorder %s13, 0
    %p152 = por %p150, %p151
    %p153 = scmp.ne.s32.totalorder %s145, %s147
    %p154 = scmp.eq.s32.totalorder %s18, 1
    %p155 = por %p153, %p154
    %p156 = scmp.ne.s32.totalorder %s147, %s148
    %p157 = scmp.eq.s32.totalorder %s18, 0
    %p158 = por %p156, %p157
    %p159 = scmp.ne.s32.totalorder %s147, %s148
    %p160 = scmp.eq.s32.totalorder %s19, 1
    %p161 = por %p159, %p160
    %p163 = scmp.ne.s32.totalorder %s148, %s162
    %p164 = scmp.eq.s32.totalorder %s19, 0
    %p165 = por %p163, %p164
    %s167 = sadd.s32 %s166, 1
    %p170 = scmp.eq.s32.totalorder %s13, 1
    %p171 = scmp.ne.s32.totalorder %s166, %s168
    %p172 = scmp.eq.s32.totalorder %s13, 0
    %p173 = por %p171, %p172
    %p174 = scmp.ne.s32.totalorder %s166, %s168
    %p175 = scmp.eq.s32.totalorder %s18, 1
    %p176 = por %p174, %p175
    %p177 = scmp.ne.s32.totalorder %s168, %s169
    %p178 = scmp.eq.s32.totalorder %s18, 0
    %p179 = por %p177, %p178
    %p180 = scmp.ne.s32.totalorder %s168, %s169
    %p181 = scmp.eq.s32.totalorder %s19, 1
    %p182 = por %p180, %p181
    %p184 = scmp.ne.s32.totalorder %s169, %s183
    %p185 = scmp.eq.s32.totalorder %s19, 0
    %p186 = por %p184, %p185
    %s187 = ssub.s32 %s20, %s32
    %s188 = ssub.s32 %s21, %s28
    %s189 = sor.u32 %s187, %s188
    %p190 = scmp.eq.s32.totalorder %s189, 0
    %s192 = sadd.s32 %s191, 1
    %s193 = scalar_select %p190, %s191, %s192
    %p196 = pneg %p190
    %p197 = scmp.eq.s32.totalorder %s13, 1
    %p198 = por %p196, %p197
    %p199 = scmp.ne.s32.totalorder %s191, %s194
    %p200 = scmp.eq.s32.totalorder %s13, 0
    %p201 = por %p199, %p200
    %p202 = scmp.ne.s32.totalorder %s191, %s194
    %p203 = scmp.eq.s32.totalorder %s18, 1
    %p204 = por %p202, %p203
    %p205 = scmp.ne.s32.totalorder %s194, %s195
    %p206 = scmp.eq.s32.totalorder %s18, 0
    %p207 = por %p205, %p206
    %p208 = scmp.ne.s32.totalorder %s194, %s195
    %p209 = scmp.eq.s32.totalorder %s19, 1
    %p210 = por %p208, %p209
    %p212 = scmp.ne.s32.totalorder %s195, %s211
    %p213 = scmp.eq.s32.totalorder %s19, 0
    %p214 = por %p212, %p213
    %p215 = scmp.le.s32.totalorder 1, %s13
    %p216 = scmp.lt.s32.totalorder %s13, 3
    %p217 = pnand %p215, %p216
    %p218 = pneg %p217
    // Predicated region
    $region9: #{transformer_encoder.13} parent=5 // pred_check
      _
    $region10: #{transformer_encoder.13} parent=5 // pred_check_branch
      %220 = sbr.rel (%p217) target = $region12
    $region11: #{transformer_encoder.13} parent=5 // pred_region
      %s221 = ssub.s32 %s13, 1
      // Predicated region
      $region13: #{transformer_encoder.13} parent=11 // pred_check
        %p222 = pneg %p74
      $region14: #{transformer_encoder.13} parent=11 // pred_check_branch
        %224 = sbr.rel (%p222) target = $region16
      $region15: #{transformer_encoder.13} parent=11 // pred_region
        _
      $region16: #{transformer_encoder.13} parent=11 // pred_fallthru
        _
      // Predicated region
      $region17: #{transformer_encoder.13} parent=11 // pred_check
        %p225 = pneg %p95
      $region18: #{transformer_encoder.13} parent=11 // pred_check_branch
        %227 = sbr.rel (%p225) target = $region20
      $region19: #{transformer_encoder.13} parent=11 // pred_region
        _
      $region20: #{transformer_encoder.13} parent=11 // pred_fallthru
        _
      // Predicated region
      $region21: #{transformer_encoder.13} parent=11 // pred_check
        %p228 = pneg %p116
      $region22: #{transformer_encoder.13} parent=11 // pred_check_branch
        %230 = sbr.rel (%p228) target = $region24
      $region23: #{transformer_encoder.13} parent=11 // pred_region
        _
      $region24: #{transformer_encoder.13} parent=11 // pred_fallthru
        _
      // Predicated region
      $region25: #{transformer_encoder.13} parent=11 // pred_check
        %p231 = pneg %p137
      $region26: #{transformer_encoder.13} parent=11 // pred_check_branch
        %233 = sbr.rel (%p231) target = $region28
      $region27: #{transformer_encoder.13} parent=11 // pred_region
        _
      $region28: #{transformer_encoder.13} parent=11 // pred_fallthru
        _
      // Predicated region
      $region29: #{transformer_encoder.13} parent=11 // pred_check
        %p234 = pneg %p158
      $region30: #{transformer_encoder.13} parent=11 // pred_check_branch
        %236 = sbr.rel (%p234) target = $region32
      $region31: #{transformer_encoder.13} parent=11 // pred_region
        _
      $region32: #{transformer_encoder.13} parent=11 // pred_fallthru
        _
      // Predicated region
      $region33: #{transformer_encoder.13} parent=11 // pred_check
        %p237 = pneg %p179
      $region34: #{transformer_encoder.13} parent=11 // pred_check_branch
        %239 = sbr.rel (%p237) target = $region36
      $region35: #{transformer_encoder.13} parent=11 // pred_region
        _
      $region36: #{transformer_encoder.13} parent=11 // pred_fallthru
        _
    $region12: #{transformer_encoder.13} parent=5 // pred_fallthru
      _
    %p240 = scmp.lt.s32.totalorder %s13, 2
    // Predicated region
    $region37: #{transformer_encoder.13} parent=5 // pred_check
      %p241 = pneg %p240
    $region38: #{transformer_encoder.13} parent=5 // pred_check_branch
      %243 = sbr.rel (%p241) target = $region40
    $region39: #{transformer_encoder.13} parent=5 // pred_region
      // Predicated region
      $region41: #{transformer_encoder.13} parent=39 // pred_check
        %p244 = pneg %p47
      $region42: #{transformer_encoder.13} parent=39 // pred_check_branch
        %246 = sbr.rel (%p244) target = $region44
      $region43: #{transformer_encoder.13} parent=39 // pred_region
        %p247 = scmp.lt.s32.totalorder %s20, 1
        %s248 = scalar_select %p247, %s20, 1
        %p249 = scmp.lt.s32.totalorder %s21, 0
        %s250 = scalar_select %p249, %s21, 0
        %s251 = sadd.s32 %s250, %s248
        %s252 = smul.addr %s251, 4
        %s253 = scalar_lea.vmem %s0, %s252
      $region44: #{transformer_encoder.13} parent=39 // pred_fallthru
        _
    $region40: #{transformer_encoder.13} parent=5 // pred_fallthru
      _
    %p254 = scmp.le.s32.totalorder 1, %s13
    %p255 = scmp.lt.s32.totalorder %s13, 3
    %p256 = pnand %p254, %p255
    %p257 = pneg %p256
    // Predicated region
    $region45: #{transformer_encoder.13} parent=5 // pred_check
      _
    $region46: #{transformer_encoder.13} parent=5 // pred_check_branch
      %259 = sbr.rel (%p256) target = $region48
    $region47: #{transformer_encoder.13} parent=5 // pred_region
      %s260 = ssub.s32 %s13, 1
      %p261 = scmp.lt.s32.totalorder %s22, 1
      %s262 = scalar_select %p261, %s22, 1
      %p263 = scmp.lt.s32.totalorder %s23, 0
      %s264 = scalar_select %p263, %s23, 0
      %s265 = sadd.s32 %s264, %s262
      %s266 = smul.addr %s265, 4
      %s267 = scalar_lea.vmem %s0, %s266
      %p268 = pneg %p53
      %p269 = pneg %p50
      %p270 = pneg %p74
      %p271 = pneg %p71
      %p272 = pneg %p95
      %p273 = pneg %p92
      %p274 = pneg %p116
      %p275 = pneg %p113
      %p276 = pneg %p137
      %p277 = pneg %p134
      %p278 = pneg %p158
      %p279 = pneg %p155
      %p280 = pneg %p179
      %p281 = pneg %p176
      %p282 = pneg %p207
      %p283 = pneg %p204
      %p284 = scmp.lt.s32.totalorder %s22, 1
      %s285 = scalar_select %p284, %s22, 1
      %p286 = scmp.lt.s32.totalorder %s23, 0
      %s287 = scalar_select %p286, %s23, 0
      %s288 = sadd.s32 %s287, %s285
      %s289 = smul.addr %s288, 4
      %s290 = scalar_lea.vmem %s7, %s289
      %p291 = scmp.lt.s32.totalorder %s22, 1
      %s292 = scalar_select %p291, %s22, 1
      %p293 = scmp.lt.s32.totalorder %s23, 0
      %s294 = scalar_select %p293, %s23, 0
      %s295 = sadd.s32 %s294, %s292
      %s296 = smul.addr %s295, 4
      %s297 = scalar_lea.vmem %s0, %s296
      %p298 = scmp.lt.s32.totalorder %s22, 1
      %s299 = scalar_select %p298, %s22, 1
      %p300 = scmp.lt.s32.totalorder %s23, 0
      %s301 = scalar_select %p300, %s23, 0
      %s302 = sadd.s32 %s301, %s299
      %s303 = smul.addr %s302, 4
      %s304 = scalar_lea.vmem %s7, %s303
      %v306 = vld [vmem:[%s297] sm:$0xf]
      %v307 = vld [vmem:[%s1] sm:$0xf]
      %v308 = vld [vmem:[%s1 + $0x4] sm:$0xf]
      %v309 = vld [vmem:[%s1 + $0x8] sm:$0xf]
      %v310 = vld [vmem:[%s1 + $0xc] sm:$0xf]
      %v311 = vld [vmem:[%s2] sm:$0x1]
      %v313 = vlaneseq
      %v314 = vshrl.u32 %v313, 7
      %v315 = vsub.s32 0, %v314
      %v316 = vrot.slane %v311, %v315
      %v322 = vunpack.c.l.b16 %v307
      %v323 = vunpack.c.l.b16 %v308
      %v324 = vunpack.c.l.b16 %v309
      %v325 = vunpack.c.l.b16 %v310
      %v326 = vpack.c.b16 %v323, %v322
      %v327 = vpack.c.b16 %v325, %v324
      %vm330 = vcmask 261120
      %v332 = vsel %vm330, %v306, 0
      %334 = vmatprep.subr.bf16.mxu0 0
      %335 = vmatpush1.bf16.msra.mxu0 %v326
      %336 = vmatprep.subr.bf16.mxu0 0
      %337 = vmatpush1.bf16.msra.mxu0 %v327
      %338 = vmatprep.subr.bf16.mxu0 0
      %339 = vmatpush1.bf16.msra.mxu0 0
      %340 = vmatprep.subr.bf16.mxu0 0
      %341 = vmatpush1.bf16.msra.mxu0 0
      %342 = vmatprep.subr.bf16.mxu0 0
      %343 = vmatpush1.bf16.msra.mxu0 0
      %344 = vmatprep.subr.bf16.mxu0 0
      %345 = vmatpush1.bf16.msra.mxu0 0
      %346 = vmatprep.subr.bf16.mxu0 0
      %347 = vmatpush1.bf16.msra.mxu0 0
      %348 = vmatprep.subr.bf16.mxu0 0
      %349 = vmatpush1.bf16.msra.mxu0 0
      %350 = vmatprep.subr.bf16.mxu0 0
      %351 = vmatpush1.bf16.msra.mxu0 0
      %352 = vmatprep.subr.bf16.mxu0 0
      %353 = vmatpush1.bf16.msra.mxu0 0
      %354 = vmatprep.subr.bf16.mxu0 0
      %355 = vmatpush1.bf16.msra.mxu0 0
      %356 = vmatprep.subr.bf16.mxu0 0
      %357 = vmatpush1.bf16.msra.mxu0 0
      %358 = vmatprep.subr.bf16.mxu0 0
      %359 = vmatpush1.bf16.msra.mxu0 0
      %360 = vmatprep.subr.bf16.mxu0 0
      %361 = vmatpush1.bf16.msra.mxu0 0
      %362 = vmatprep.subr.bf16.mxu0 0
      %363 = vmatpush1.bf16.msra.mxu0 0
      %364 = vmatprep.subr.bf16.mxu0 0
      %365 = vmatpush1.bf16.msra.mxu0 0
      %366 = vmatprep.mubr.bf16.mxu0 0
      %367 = vmatmul.mubr.bf16.gmra.mrb[0].mxu0 %v332
      %v368 = vpop.f32.mrb[0].mxu0
      %v369 = vadd.f32 %v316, %v368
      %v370 = vpop.f32.mrb[0].mxu0
      %v371 = vpop.f32.mrb[0].mxu0
      %v372 = vpop.f32.mrb[0].mxu0
      %373 = vdwg.mxu0
      %v374 = vmax.f32 %v369, 0.0
      %v375 = vpack.c.bf16 %v374, %v374
      %v376 = vld [vmem:[%s3] sm:$0xf]
      %v377 = vld [vmem:[%s3 + $0x4] sm:$0xf]
      %v378 = vld [vmem:[%s3 + $0x8] sm:$0xf]
      %v379 = vld [vmem:[%s3 + $0xc] sm:$0xf]
      %v380 = vld [vmem:[%s3 + $0x10] sm:$0xf]
      %v381 = vld [vmem:[%s3 + $0x14] sm:$0xf]
      %v382 = vld [vmem:[%s3 + $0x18] sm:$0xf]
      %v383 = vld [vmem:[%s3 + $0x1c] sm:$0xf]
      %v384 = vld [vmem:[%s4] sm:$0x1]
      %v386 = vlaneseq
      %v387 = vshrl.u32 %v386, 7
      %v388 = vsub.s32 0, %v387
      %v389 = vrot.slane %v384, %v388
      %v399 = vunpack.c.l.b16 %v376
      %v400 = vunpack.c.l.b16 %v377
      %v401 = vunpack.c.l.b16 %v378
      %v402 = vunpack.c.l.b16 %v379
      %v403 = vunpack.c.l.b16 %v380
      %v404 = vunpack.c.l.b16 %v381
      %v405 = vunpack.c.l.b16 %v382
      %v406 = vunpack.c.l.b16 %v383
      %v407 = vpack.c.b16 %v400, %v399
      %v408 = vpack.c.b16 %v402, %v401
      %v409 = vpack.c.b16 %v404, %v403
      %v410 = vpack.c.b16 %v406, %v405
      %vm415 = vcmask 523264
      %v417 = vsel %vm415, %v375, 0
      %419 = vmatprep.subr.bf16.mxu0 0
      %420 = vmatpush1.bf16.msra.mxu0 %v407
      %421 = vmatprep.subr.bf16.mxu0 0
      %422 = vmatpush1.bf16.msra.mxu0 %v408
      %423 = vmatprep.subr.bf16.mxu0 0
      %424 = vmatpush1.bf16.msra.mxu0 %v409
      %425 = vmatprep.subr.bf16.mxu0 0
      %426 = vmatpush1.bf16.msra.mxu0 %v410
      %427 = vmatprep.subr.bf16.mxu0 0
      %428 = vmatpush1.bf16.msra.mxu0 0
      %429 = vmatprep.subr.bf16.mxu0 0
      %430 = vmatpush1.bf16.msra.mxu0 0
      %431 = vmatprep.subr.bf16.mxu0 0
      %432 = vmatpush1.bf16.msra.mxu0 0
      %433 = vmatprep.subr.bf16.mxu0 0
      %434 = vmatpush1.bf16.msra.mxu0 0
      %435 = vmatprep.subr.bf16.mxu0 0
      %436 = vmatpush1.bf16.msra.mxu0 0
      %437 = vmatprep.subr.bf16.mxu0 0
      %438 = vmatpush1.bf16.msra.mxu0 0
      %439 = vmatprep.subr.bf16.mxu0 0
      %440 = vmatpush1.bf16.msra.mxu0 0
      %441 = vmatprep.subr.bf16.mxu0 0
      %442 = vmatpush1.bf16.msra.mxu0 0
      %443 = vmatprep.subr.bf16.mxu0 0
      %444 = vmatpush1.bf16.msra.mxu0 0
      %445 = vmatprep.subr.bf16.mxu0 0
      %446 = vmatpush1.bf16.msra.mxu0 0
      %447 = vmatprep.subr.bf16.mxu0 0
      %448 = vmatpush1.bf16.msra.mxu0 0
      %449 = vmatprep.subr.bf16.mxu0 0
      %450 = vmatpush1.bf16.msra.mxu0 0
      %451 = vmatprep.mubr.bf16.mxu0 0
      %452 = vmatmul.mubr.bf16.gmra.mrb[0].mxu0 %v417
      %v453 = vpop.f32.mrb[0].mxu0
      %v454 = vadd.f32 %v389, %v453
      %v455 = vpop.f32.mrb[0].mxu0
      %v456 = vpop.f32.mrb[0].mxu0
      %v457 = vpop.f32.mrb[0].mxu0
      %458 = vdwg.mxu0
      %v459 = vunpack.c.l.bf16 %v306
      %v460 = vadd.f32 %v459, %v454
      %v461 = vsel %vm330, %v460, 0.0
      %462 = vadd.xlane.f32.xlu0 %v461
      %v463 = vpop.xlane.xlu0 %462
      %v464 = vrcp.pop 32.0
      %v465 = vmul.f32 %v463, %v464
      %v466 = vsub.f32 %v460, %v465
      %v467 = vmul.f32 %v466, %v466
      %v468 = vsel %vm330, %v467, 0.0
      %469 = vadd.xlane.f32.xlu0 %v468
      %v470 = vpop.xlane.xlu0 %469
      %v471 = vmul.f32 %v470, %v464
      %v472 = vadd.f32 %v471, 1e-05
      %v473 = vrsqrt.pop %v472
      %v474 = vmul.f32 %v466, %v473
      %v475 = vld [vmem:[%s5] sm:$0x1]
      %v477 = vlaneseq
      %v478 = vshrl.u32 %v477, 7
      %v479 = vsub.s32 0, %v478
      %v480 = vrot.slane %v475, %v479
      %v482 = vmul.f32 %v474, %v480
      %v483 = vld [vmem:[%s6] sm:$0x1]
      %v485 = vlaneseq
      %v486 = vshrl.u32 %v485, 7
      %v487 = vsub.s32 0, %v486
      %v488 = vrot.slane %v483, %v487
      %v490 = vadd.f32 %v482, %v488
      %v491 = vpack.c.bf16 %v490, %v490
      %vm492 = vcmask 257024
      %493 = vst.msk [vmem:[%s304] sm:$0xf] %vm492, %v491
      %p494 = scmp.lt.s32.totalorder %s22, 1
      %s495 = scalar_select %p494, %s22, 1
      %p496 = scmp.lt.s32.totalorder %s23, 0
      %s497 = scalar_select %p496, %s23, 0
      %s498 = sadd.s32 %s497, %s495
      %s499 = smul.addr %s498, 4
      %s500 = scalar_lea.vmem %s7, %s499
      // Predicated region
      $region49: #{transformer_encoder.13} parent=47 // pred_check
        %p501 = pneg %p204
      $region50: #{transformer_encoder.13} parent=47 // pred_check_branch
        %503 = sbr.rel (%p501) target = $region52
      $region51: #{transformer_encoder.13} parent=47 // pred_region
        _
      $region52: #{transformer_encoder.13} parent=47 // pred_fallthru
        _
    $region48: #{transformer_encoder.13} parent=5 // pred_fallthru
      _
    %p504 = scmp.le.s32.totalorder 2, %s13
    // Predicated region
    $region53: #{transformer_encoder.13} parent=5 // pred_check
      %p505 = pneg %p504
    $region54: #{transformer_encoder.13} parent=5 // pred_check_branch
      %507 = sbr.rel (%p505) target = $region56
    $region55: #{transformer_encoder.13} parent=5 // pred_region
      %s508 = ssub.s32 %s13, 2
      // Predicated region
      $region57: #{transformer_encoder.13} parent=55 // pred_check
        %p509 = pneg %p210
      $region58: #{transformer_encoder.13} parent=55 // pred_check_branch
        %511 = sbr.rel (%p509) target = $region60
      $region59: #{transformer_encoder.13} parent=55 // pred_region
        %p512 = scmp.lt.s32.totalorder %s24, 1
        %s513 = scalar_select %p512, %s24, 1
        %p514 = scmp.lt.s32.totalorder %s25, 0
        %s515 = scalar_select %p514, %s25, 0
        %s516 = sadd.s32 %s515, %s513
        %s517 = smul.addr %s516, 4
        %s518 = scalar_lea.vmem %s7, %s517
      $region60: #{transformer_encoder.13} parent=55 // pred_fallthru
        _
    $region56: #{transformer_encoder.13} parent=5 // pred_fallthru
      _
  $region6: #{transformer_encoder.13} parent=0 // loop_footer
    %s17 = sadd.s32 1, %s13
  $region7: #{transformer_encoder.13} parent=0 // loop_footer_branch
    %12 = sbr.rel target = $region3
  $region8: #{transformer_encoder.13} parent=0 // loop_exit
    _

</llo_original>
